<compile_context>
chip_gen: v5e
topology: v5e:2x2
jax: 0.10.0
libtpu: 0.0.40
codegen_flags: <defaults>
</compile_context>

<pallas_src>
import functools

import jax
import jax.numpy as jnp
from jax.experimental import pallas as pl
from jax.experimental.pallas import tpu as pltpu


VMEM_LIMIT_BYTES = 32 * 1024 * 1024  # above v5e's 16 MiB default, == v6e/v7x default


# -----------------------------------------------------------------------------
# Kernel 1: TypedLinear over contiguous-type row tiles (+ optional fused LayerNorm)
#   Node types are contiguous row blocks, so a scalar-prefetched block->type table
#   selects exactly ONE per-type weight slice per row tile (grouped-matmul pattern).
# -----------------------------------------------------------------------------
def _typed_linear_kernel(bt_ref, x_ref, w_ref, o_ref):
    # x_ref: [tm, Din] bf16, w_ref: [1, Din, Dout] bf16 (per-type slice via index_map)
    o_ref[...] = jnp.dot(x_ref[...], w_ref[0],
                         preferred_element_type=jnp.float32).astype(o_ref.dtype)


def _typed_linear_ln_kernel(bt_ref, x_ref, w_ref, g_ref, b_ref, o_ref, *, eps):
    y = jnp.dot(x_ref[...], w_ref[0], preferred_element_type=jnp.float32)
    # Single-pass LayerNorm statistics (stats already f32): var = E[y^2] - mean^2.
    # NOTE: correct only because the full Dout lives in one output block (dout untiled).
    mean = jnp.mean(y, axis=-1, keepdims=True)
    ex2 = jnp.mean(y * y, axis=-1, keepdims=True)
    inv = jax.lax.rsqrt(ex2 - mean * mean + eps)
    o_ref[...] = ((y - mean) * inv * g_ref[...] + b_ref[...]).astype(o_ref.dtype)


def typed_linear(x, w, block_types, gamma=None, beta=None, *, tm=256, eps=1e-5):
    """out[i] = x[i] @ w[type_of_row_block(i)]; optional fused row-wise LayerNorm."""
    n, din = x.shape
    _, din2, dout = w.shape
    assert din == din2 and n % tm == 0, "rows must tile evenly"
    num_blocks = n // tm

    x_spec = pl.BlockSpec((tm, din), lambda i, bt: (i, 0))
    w_spec = pl.BlockSpec((1, din, dout), lambda i, bt: (bt[i], 0, 0))
    o_spec = pl.BlockSpec((tm, dout), lambda i, bt: (i, 0))

    if gamma is not None:
        kernel = functools.partial(_typed_linear_ln_kernel, eps=eps)
        gb_spec = pl.BlockSpec((1, dout), lambda i, bt: (0, 0))
        in_specs = [x_spec, w_spec, gb_spec, gb_spec]
        args = (block_types, x, w, gamma, beta)
    else:
        kernel = _typed_linear_kernel
        in_specs = [x_spec, w_spec]
        args = (block_types, x, w)

    return pl.pallas_call(
        kernel,
        out_shape=jax.ShapeDtypeStruct((n, dout), x.dtype),
        grid_spec=pltpu.PrefetchScalarGridSpec(
            num_scalar_prefetch=1,
            grid=(num_blocks,),
            in_specs=in_specs,
            out_specs=o_spec,
        ),
        compiler_params=pltpu.CompilerParams(
            dimension_semantics=("parallel",),
            vmem_limit_bytes=VMEM_LIMIT_BYTES),
    )(*args)


# -----------------------------------------------------------------------------
# Kernel 2: dense bipartite aggregation  out = A @ u  (or A.T @ u without
# materializing the transpose).  K-reduction grid axis, f32 VMEM accumulator,
# source features u kept VMEM-resident (DMA'd once).
# -----------------------------------------------------------------------------
def _agg_kernel(a_ref, u_ref, o_ref, acc_ref, *, tk, transpose_a):
    kk = pl.program_id(1)

    @pl.when(kk == 0)
    def _():
        acc_ref[...] = jnp.zeros_like(acc_ref)

    start = pl.multiple_of(kk * tk, tk)
    u_blk = u_ref[pl.ds(start, tk), :]           # slice of the resident source features
    if transpose_a:
        # a_ref: [tk, tm]; contract axis 0 with u_blk axis 0  ==  (A.T @ u) tile.
        acc_ref[...] += jax.lax.dot_general(
            a_ref[...], u_blk, (((0,), (0,)), ((), ())),
            preferred_element_type=jnp.float32)
    else:
        acc_ref[...] += jnp.dot(a_ref[...], u_blk,
                                preferred_element_type=jnp.float32)

    @pl.when(kk == pl.num_programs(1) - 1)
    def _():
        o_ref[...] = acc_ref[...].astype(o_ref.dtype)


def bipartite_agg(adj, u_src, *, tm=256, tk=256, transpose_a=False):
    """transpose_a=False: out = adj @ u_src        (adj: [m, k])
       transpose_a=True : out = adj.T @ u_src      (adj: [k, m], transpose never built)."""
    if transpose_a:
        k, m = adj.shape
        a_spec = pl.BlockSpec((tk, tm), lambda i, kk: (kk, i))
    else:
        m, k = adj.shape
        a_spec = pl.BlockSpec((tm, tk), lambda i, kk: (i, kk))
    k2, dout = u_src.shape
    assert k2 == k and m % tm == 0 and k % tk == 0

    kernel = functools.partial(_agg_kernel, tk=tk, transpose_a=transpose_a)
    return pl.pallas_call(
        kernel,
        out_shape=jax.ShapeDtypeStruct((m, dout), u_src.dtype),
        grid_spec=pltpu.PrefetchScalarGridSpec(
            num_scalar_prefetch=0,
            grid=(m // tm, k // tk),
            in_specs=[
                a_spec,
                # Full-extent, constant-index block: u_src is DMA'd to VMEM once and
                # stays resident for the whole grid instead of being re-streamed from
                # HBM once per row tile.  (Assumes k*dout*2B fits the VMEM budget;
                # tile this spec over k for very large graphs.)
                pl.BlockSpec((k, dout), lambda i, kk: (0, 0)),
            ],
            out_specs=pl.BlockSpec((tm, dout), lambda i, kk: (i, 0)),
            scratch_shapes=[pltpu.VMEM((tm, dout), jnp.float32)],
        ),
        compiler_params=pltpu.CompilerParams(
            dimension_semantics=("parallel", "arbitrary"),
            vmem_limit_bytes=VMEM_LIMIT_BYTES),
    )(adj, u_src)


# -----------------------------------------------------------------------------
# Full forward.  Nodes are laid out items-first (type 0) then users (type 1);
# `bip` is the dense item(dst) x user(src) adjacency block.  x/bip expected bf16.
# -----------------------------------------------------------------------------
def simple_hetero_conv_forward(params, bip, x, n_item, *, use_norm=True, tm=256, tk=256):
    n = x.shape[0]
    n_user = n - n_item
    assert n_item % tm == 0 and n_user % tm == 0, "type blocks must tile evenly"
    cdt = x.dtype
    block_types = jnp.concatenate([
        jnp.zeros((n_item // tm,), jnp.int32),
        jnp.ones((n_user // tm,), jnp.int32),
    ])

    if use_norm:
        # Reference returns LayerNorm(v): the aggregate and second TypedLinear are
        # dead values, so they are skipped and LN is fused into the single kernel.
        return typed_linear(x, params["w_v"].astype(cdt), block_types,
                            params["ln_gamma"].astype(jnp.float32),
                            params["ln_beta"].astype(jnp.float32), tm=tm)

    # use_norm=False: h = Dropout(TypedLinear_a(A @ v)); dropout is identity in eval.
    # Fold the two TypedLinears: (A @ (x_src @ w_v[src])) @ w_a[dst]
    #                          == A @ (x_src @ (w_v[src] @ w_a[dst])).
    # Row type t only ever feeds destination type (1 - t) in the bipartite graph.
    hi = jax.lax.Precision.HIGHEST
    w_v = params["w_v"].astype(jnp.float32)
    w_a = params["w_a"].astype(jnp.float32)
    w_eff = jnp.stack([jnp.dot(w_v[0], w_a[1], precision=hi),
                       jnp.dot(w_v[1], w_a[0], precision=hi)]).astype(cdt)
    u = typed_linear(x, w_eff, block_types, tm=tm)
    u_item, u_user = u[:n_item], u[n_item:]
    h_item = bipartite_agg(bip, u_user, tm=tm, tk=tk, transpose_a=False)   # item <- user
    h_user = bipartite_agg(bip, u_item, tm=tm, tk=tk, transpose_a=True)    # user <- item
    # TODO(synk): the commented-out residual (x @ residual_w) in the reference is skipped.
    return jnp.concatenate([h_item, h_user], axis=0)


# -----------------------------------------------------------------------------
# Pure-JAX f32 reference (module semantics) for correctness checking.
# -----------------------------------------------------------------------------
def reference_forward(params, bip, x, n_item, use_norm=True, eps=1e-5):
    hi = jax.lax.Precision.HIGHEST
    w_v, w_a = params["w_v"], params["w_a"]
    x_item, x_user = x[:n_item], x[n_item:]
    v_item = jnp.dot(x_item, w_v[0], precision=hi)
    v_user = jnp.dot(x_user, w_v[1], precision=hi)
    if use_norm:
        v = jnp.concatenate([v_item, v_user], axis=0)
        mean = jnp.mean(v, axis=-1, keepdims=True)
        var = jnp.mean((v - mean) ** 2, axis=-1, keepdims=True)
        return (v - mean) / jnp.sqrt(var + eps) * params["ln_gamma"] + params["ln_beta"]
    h_item = jnp.dot(jnp.dot(bip, v_user, precision=hi), w_a[0], precision=hi)
    h_user = jnp.dot(jnp.dot(bip.T, v_item, precision=hi), w_a[1], precision=hi)
    return jnp.concatenate([h_item, h_user], axis=0)


if __name__ == "__main__":
    # Small but MXU-friendly shapes: 256 feature dims / 256-row type blocks.
    in_size = hidden_size = out_size = 256
    num_ntypes = 2
    n_item, n_user = 256, 256
    N = n_item + n_user

    key = jax.random.PRNGKey(0)
    k_x, k_wv, k_wa, k_adj, k_g, k_b = jax.random.split(key, 6)

    x = jax.random.normal(k_x, (N, in_size), jnp.float32)
    # Dense bipartite item(dst) x user(src) 0/1 adjacency block (exact in bf16).
    bip = (jax.random.uniform(k_adj, (n_item, n_user)) < 0.1).astype(jnp.float32)

    params = {
        "w_v": jax.random.normal(k_wv, (num_ntypes, in_size, hidden_size), jnp.float32)
        * (2.0 / (in_size + hidden_size)) ** 0.5,
        "w_a": jax.random.normal(k_wa, (num_ntypes, hidden_size, out_size), jnp.float32)
        * (2.0 / (hidden_size + out_size)) ** 0.5,
        "ln_gamma": 1.0 + 0.1 * jax.random.normal(k_g, (1, hidden_size), jnp.float32),
        "ln_beta": 0.1 * jax.random.normal(k_b, (1, hidden_size), jnp.float32),
    }

    # bf16 copies for the kernels (MXU-native dtype; halves HBM / VMEM traffic).
    x_bf = x.astype(jnp.bfloat16)
    bip_bf = bip.astype(jnp.bfloat16)

    out_norm = jax.block_until_ready(
        simple_hetero_conv_forward(params, bip_bf, x_bf, n_item, use_norm=True))
    out_agg = jax.block_until_ready(
        simple_hetero_conv_forward(params, bip_bf, x_bf, n_item, use_norm=False))

    ref_norm = reference_forward(params, bip, x, n_item, use_norm=True)
    ref_agg = reference_forward(params, bip, x, n_item, use_norm=False)

    assert out_norm.shape == (N, hidden_size) and out_norm.dtype == jnp.bfloat16
    assert out_agg.shape == (N, out_size) and out_agg.dtype == jnp.bfloat16
    # bf16 operands/outputs -> loosened tolerances vs the f32 reference.
    assert jnp.allclose(out_norm.astype(jnp.float32), ref_norm, atol=8e-2, rtol=5e-2), \
        "use_norm=True mismatch"
    assert jnp.allclose(out_agg.astype(jnp.float32), ref_agg, atol=2.5e-1, rtol=5e-2), \
        "use_norm=False mismatch"

    print("KERNEL_OK")
</pallas_src>

<mosaic_0001>
module attributes {stable_mosaic.version = 11 : i64} {
  func.func @_typed_linear_ln_kernel(%arg0: i32, %arg1: memref<2xi32, #tpu.memory_space<smem>>, %arg2: memref<256x256xbf16, #tpu.memory_space<vmem>>, %arg3: memref<1x256x256xbf16, #tpu.memory_space<vmem>>, %arg4: memref<1x256xf32, #tpu.memory_space<vmem>>, %arg5: memref<1x256xf32, #tpu.memory_space<vmem>>, %arg6: memref<256x256xbf16, #tpu.memory_space<vmem>>) attributes {dimension_semantics = [#tpu.dimension_semantics<parallel>], iteration_bounds = array<i64: 2>, scalar_prefetch = 1 : i64, scratch_operands = 0 : i64, tpu.core_type = #tpu.core_type<tc>, window_params = [{transform_indices = @transform_0, window_bounds = array<i64: 256, 256>}, {transform_indices = @transform_1, window_bounds = array<i64: 1, 256, 256>}, {pipeline_mode = #tpu.pipeline_mode<synchronous>, transform_indices = @transform_2, window_bounds = array<i64: 1, 256>}, {pipeline_mode = #tpu.pipeline_mode<synchronous>, transform_indices = @transform_3, window_bounds = array<i64: 1, 256>}, {transform_indices = @transform_4, window_bounds = array<i64: 256, 256>}]} {
    %c0 = arith.constant 0 : index
    %c0_0 = arith.constant 0 : index
    %0 = vector.load %arg2[%c0, %c0_0] : memref<256x256xbf16, #tpu.memory_space<vmem>>, vector<256x256xbf16>
    %c0_1 = arith.constant 0 : index
    %c0_2 = arith.constant 0 : index
    %c0_3 = arith.constant 0 : index
    %1 = vector.load %arg3[%c0_1, %c0_2, %c0_3] : memref<1x256x256xbf16, #tpu.memory_space<vmem>>, vector<1x256x256xbf16>
    %2 = vector.shape_cast %1 : vector<1x256x256xbf16> to vector<256x256xbf16>
    %cst = arith.constant dense<0.000000e+00> : vector<256x256xf32>
    %3 = tpu.matmul %0, %2, %cst {dimension_numbers = #tpu.dot_dimension_numbers<[1], [0], [0], [1], [0, 0, 1, 1], [], []>} : vector<256x256xbf16>, vector<256x256xbf16>, vector<256x256xf32> -> vector<256x256xf32>
    %cst_4 = arith.constant dense<0.000000e+00> : vector<256xf32>
    %4 = vector.multi_reduction <add>, %3, %cst_4 [1] : vector<256x256xf32> to vector<256xf32>
    %5 = vector.shape_cast %4 : vector<256xf32> to vector<256x1xf32>
    %cst_5 = arith.constant 2.560000e+02 : f32
    %6 = vector.broadcast %cst_5 : f32 to vector<256x1xf32>
    %7 = arith.divf %5, %6 : vector<256x1xf32>
    %8 = arith.mulf %3, %3 : vector<256x256xf32>
    %cst_6 = arith.constant dense<0.000000e+00> : vector<256xf32>
    %9 = vector.multi_reduction <add>, %8, %cst_6 [1] : vector<256x256xf32> to vector<256xf32>
    %10 = vector.shape_cast %9 : vector<256xf32> to vector<256x1xf32>
    %cst_7 = arith.constant 2.560000e+02 : f32
    %11 = vector.broadcast %cst_7 : f32 to vector<256x1xf32>
    %12 = arith.divf %10, %11 : vector<256x1xf32>
    %13 = arith.mulf %7, %7 : vector<256x1xf32>
    %14 = arith.subf %12, %13 : vector<256x1xf32>
    %cst_8 = arith.constant 9.99999974E-6 : f32
    %15 = vector.broadcast %cst_8 : f32 to vector<256x1xf32>
    %16 = arith.addf %14, %15 : vector<256x1xf32>
    %17 = math.rsqrt %16 : vector<256x1xf32>
    %18 = vector.broadcast %7 : vector<256x1xf32> to vector<256x256xf32>
    %19 = arith.subf %3, %18 : vector<256x256xf32>
    %20 = vector.broadcast %17 : vector<256x1xf32> to vector<256x256xf32>
    %21 = arith.mulf %19, %20 : vector<256x256xf32>
    %c0_9 = arith.constant 0 : index
    %c0_10 = arith.constant 0 : index
    %22 = vector.load %arg4[%c0_9, %c0_10] : memref<1x256xf32, #tpu.memory_space<vmem>>, vector<1x256xf32>
    %23 = vector.broadcast %22 : vector<1x256xf32> to vector<256x256xf32>
    %24 = arith.mulf %21, %23 : vector<256x256xf32>
    %c0_11 = arith.constant 0 : index
    %c0_12 = arith.constant 0 : index
    %25 = vector.load %arg5[%c0_11, %c0_12] : memref<1x256xf32, #tpu.memory_space<vmem>>, vector<1x256xf32>
    %26 = vector.broadcast %25 : vector<1x256xf32> to vector<256x256xf32>
    %27 = arith.addf %24, %26 : vector<256x256xf32>
    %28 = arith.truncf %27 : vector<256x256xf32> to vector<256x256xbf16>
    %c0_13 = arith.constant 0 : index
    %c0_14 = arith.constant 0 : index
    %29 = vector.load %arg6[%c0_13, %c0_14] : memref<256x256xbf16, #tpu.memory_space<vmem>>, vector<256x256xbf16>
    tpu.vector_store %arg6[%c0_13, %c0_14], %28 {strides = array<i32>} : memref<256x256xbf16, #tpu.memory_space<vmem>>, vector<256x256xbf16>,
    return
  }
  func.func @transform_0(%arg0: i32, %arg1: memref<2xi32, #tpu.memory_space<smem>>) -> (i32, i32) {
    %c0_i32 = arith.constant 0 : i32
    %c0_i32_0 = arith.constant 0 : i32
    return %arg0, %c0_i32 : i32, i32
  }
  func.func @transform_1(%arg0: i32, %arg1: memref<2xi32, #tpu.memory_space<smem>>) -> (i32, i32, i32) {
    %0 = arith.index_cast %arg0 : i32 to index
    %1 = memref.load %arg1[%0] : memref<2xi32, #tpu.memory_space<smem>>
    %c0_i32 = arith.constant 0 : i32
    %c0_i32_0 = arith.constant 0 : i32
    %c0_i32_1 = arith.constant 0 : i32
    return %1, %c0_i32, %c0_i32_0 : i32, i32, i32
  }
  func.func @transform_2(%arg0: i32, %arg1: memref<2xi32, #tpu.memory_space<smem>>) -> (i32, i32) {
    %c0_i32 = arith.constant 0 : i32
    %c0_i32_0 = arith.constant 0 : i32
    %c0_i32_1 = arith.constant 0 : i32
    return %c0_i32, %c0_i32_0 : i32, i32
  }
  func.func @transform_3(%arg0: i32, %arg1: memref<2xi32, #tpu.memory_space<smem>>) -> (i32, i32) {
    %c0_i32 = arith.constant 0 : i32
    %c0_i32_0 = arith.constant 0 : i32
    %c0_i32_1 = arith.constant 0 : i32
    return %c0_i32, %c0_i32_0 : i32, i32
  }
  func.func @transform_4(%arg0: i32, %arg1: memref<2xi32, #tpu.memory_space<smem>>) -> (i32, i32) {
    %c0_i32 = arith.constant 0 : i32
    %c0_i32_0 = arith.constant 0 : i32
    return %arg0, %c0_i32 : i32, i32
  }
}

</mosaic_0001>

<llo_original>
// kernel: tpu_custom_call.1
$region0: #{tpu_custom_call.1}
  #allocation0 [shape = 'u32[]', space=smem, size = 0x4, offset = 0x4, fixed_abs, tag = 'smem constant byte address 0x4 - core index']
  #allocation1 [shape = 'u32[72,128]{1,0:T(1,128)}', space=vmem, size = 0x9000, scoped, tag = 'internal scratch']
  #allocation2 [shape = 's32[1]{0}', space=sflag, size = 0x4, scoped, tag = 'scoped memory for tpu_custom_call.1']
  #allocation3 [shape = 'u8[512]{0}', space=smem, size = 0x200, scoped, tag = 'prefetched SMEM operand 0']
  %s0 = inlined_call_operand.hbm [shape: s32[2], index: 0, kind: input, shape index: {}]
  %s1 = inlined_call_operand.hbm [shape: bf16[512,256], index: 1, kind: input, shape index: {}]
  %s2 = inlined_call_operand.hbm [shape: bf16[2,256,256], index: 2, kind: input, shape index: {}]
  %s3 = inlined_call_operand.vmem [shape: f32[1,256], index: 3, kind: input, shape index: {}]
  %s4 = inlined_call_operand.hbm [shape: f32[1,256], index: 4, kind: input, shape index: {}]
  %s5 = inlined_call_operand.hbm [shape: bf16[512,256], index: 5, kind: output, shape index: {}]
  %s6 = sld [smem:[#allocation0]]
  $region61: #{tpu_custom_call.1} parent=0
    _
  %s8 = ssub.s32 1, %s6
  %s9 = scalar_select 0, %s8, %s6
  %s11 = sshll.u32 %s0, 4
  %s12 = int_to_ptr.hbm [resolvable:$true] %s11
  %14 = dma.hbm_to_smem %s12, 16, [#allocation3], [#allocation2]
  %16 = dma.done [#allocation2], 16
  %17 = sfence
  $region1: #{tpu_custom_call.1} parent=0
    #allocation4 [shape = 'u8[262144]{0}', space=vmem, size = 0x40000, scoped, tag = 'input window, operand 1']
    #allocation5 [shape = 's32[2]{0}', space=sflag, size = 0x8, scoped, tag = 'scoped memory for tpu_custom_call.1']
    #allocation6 [shape = 's32[2]{0}', space=sflag, size = 0x8, scoped, tag = 'scoped memory for tpu_custom_call.1']
    #allocation7 [shape = 'u8[262144]{0}', space=vmem, size = 0x40000, scoped, tag = 'input window, operand 2']
    #allocation8 [shape = 's32[2]{0}', space=sflag, size = 0x8, scoped, tag = 'scoped memory for tpu_custom_call.1']
    #allocation9 [shape = 'u8[1024]{0}', space=vmem, size = 0x400, scoped, tag = 'input window, operand 4, single buffered']
    #allocation10 [shape = 'u8[262144]{0}', space=vmem, size = 0x40000, scoped, tag = 'output window, operand 0']
    %18 = vsyncpa [#allocation5], 0
    %s19 = scalar_lea.sflag [#allocation5], 1
    %20 = vsyncpa %s19, 0
    %21 = vsyncpa [#allocation8], 0
    %s22 = scalar_lea.sflag [#allocation8], 1
    %23 = vsyncpa %s22, 0
    %24 = vsyncpa [#allocation6], 0
    %s25 = scalar_lea.sflag [#allocation6], 1
    %26 = vsyncpa %s25, 0
    loop: start=0, step=1, limit=4
    $region2: #{tpu_custom_call.1} parent=1 // loop_pre_header
      _
    $region3: #{tpu_custom_call.1} parent=1 // loop_header
      %s28 = sphi 0, %s32
      %p29 = scmp.ge.s32.totalorder %s28, 4
      %s38 = sphi 0, %s40
      %s41 = sphi 0, %s38
      %s42 = sphi 0, %s41
      %s58 = sphi 0, %s42
      %s66 = sphi 0, %s68
      %s69 = sphi 0, %s66
      %s70 = sphi 0, %s69
      %s86 = sphi 0, %s70
      %s90 = sphi 0, %s90
      %s92 = sphi 0, %s90
      %s93 = sphi 0, %s92
      %s107 = sphi 0, %s93
      %s111 = sphi 0, %s111
      %s113 = sphi 0, %s111
      %s114 = sphi 0, %s113
      %s128 = sphi 0, %s114
      %s134 = sphi 0, %s136
      %s137 = sphi 0, %s134
      %s138 = sphi 0, %s137
      %s154 = sphi 0, %s138
    $region4: #{tpu_custom_call.1} parent=1 // loop_header_branch
      %31 = sbr.rel (%p29) target = $region8
    $region5: #{tpu_custom_call.1} parent=1 // loop_body
      %s33 = ssub.s32 %s28, 1
      %s34 = ssub.s32 %s28, 2
      %s35 = sadd.s32 %s28, 1
      %s36 = ssub.s32 %s28, %s35
      %p37 = scmp.eq.s32.totalorder %s36, 0
      %s39 = sadd.s32 %s38, 1
      %s40 = scalar_select %p37, %s38, %s39
      %p43 = pneg %p37
      %p44 = scmp.eq.s32.totalorder %s28, 1
      %p45 = por %p43, %p44
      %p46 = scmp.ne.s32.totalorder %s38, %s41
      %p47 = scmp.eq.s32.totalorder %s28, 0
      %p48 = por %p46, %p47
      %p49 = scmp.ne.s32.totalorder %s38, %s41
      %p50 = scmp.eq.s32.totalorder %s33, 1
      %p51 = por %p49, %p50
      %p52 = scmp.ne.s32.totalorder %s41, %s42
      %p53 = scmp.eq.s32.totalorder %s33, 0
      %p54 = por %p52, %p53
      %p55 = scmp.ne.s32.totalorder %s41, %s42
      %p56 = scmp.eq.s32.totalorder %s34, 1
      %p57 = por %p55, %p56
      %p59 = scmp.ne.s32.totalorder %s42, %s58
      %p60 = scmp.eq.s32.totalorder %s34, 0
      %p61 = por %p59, %p60
      %s62 = sld [smem:[#allocation3 + %s28]]
      %s63 = sld [smem:[#allocation3 + %s35]]
      %s64 = ssub.s32 %s62, %s63
      %p65 = scmp.eq.s32.totalorder %s64, 0
      %s67 = sadd.s32 %s66, 1
      %s68 = scalar_select %p65, %s66, %s67
      %p71 = pneg %p65
      %p72 = scmp.eq.s32.totalorder %s28, 1
      %p73 = por %p71, %p72
      %p74 = scmp.ne.s32.totalorder %s66, %s69
      %p75 = scmp.eq.s32.totalorder %s28, 0
      %p76 = por %p74, %p75
      %p77 = scmp.ne.s32.totalorder %s66, %s69
      %p78 = scmp.eq.s32.totalorder %s33, 1
      %p79 = por %p77, %p78
      %p80 = scmp.ne.s32.totalorder %s69, %s70
      %p81 = scmp.eq.s32.totalorder %s33, 0
      %p82 = por %p80, %p81
      %p83 = scmp.ne.s32.totalorder %s69, %s70
      %p84 = scmp.eq.s32.totalorder %s34, 1
      %p85 = por %p83, %p84
      %p87 = scmp.ne.s32.totalorder %s70, %s86
      %p88 = scmp.eq.s32.totalorder %s34, 0
      %p89 = por %p87, %p88
      %s91 = sadd.s32 %s90, 1
      %p94 = scmp.eq.s32.totalorder %s28, 1
      %p95 = scmp.ne.s32.totalorder %s90, %s92
      %p96 = scmp.eq.s32.totalorder %s28, 0
      %p97 = por %p95, %p96
      %p98 = scmp.ne.s32.totalorder %s90, %s92
      %p99 = scmp.eq.s32.totalorder %s33, 1
      %p100 = por %p98, %p99
      %p101 = scmp.ne.s32.totalorder %s92, %s93
      %p102 = scmp.eq.s32.totalorder %s33, 0
      %p103 = por %p101, %p102
      %p104 = scmp.ne.s32.totalorder %s92, %s93
      %p105 = scmp.eq.s32.totalorder %s34, 1
      %p106 = por %p104, %p105
      %p108 = scmp.ne.s32.totalorder %s93, %s107
      %p109 = scmp.eq.s32.totalorder %s34, 0
      %p110 = por %p108, %p109
      %s112 = sadd.s32 %s111, 1
      %p115 = scmp.eq.s32.totalorder %s28, 1
      %p116 = scmp.ne.s32.totalorder %s111, %s113
      %p117 = scmp.eq.s32.totalorder %s28, 0
      %p118 = por %p116, %p117
      %p119 = scmp.ne.s32.totalorder %s111, %s113
      %p120 = scmp.eq.s32.totalorder %s33, 1
      %p121 = por %p119, %p120
      %p122 = scmp.ne.s32.totalorder %s113, %s114
      %p123 = scmp.eq.s32.totalorder %s33, 0
      %p124 = por %p122, %p123
      %p125 = scmp.ne.s32.totalorder %s113, %s114
      %p126 = scmp.eq.s32.totalorder %s34, 1
      %p127 = por %p125, %p126
      %p129 = scmp.ne.s32.totalorder %s114, %s128
      %p130 = scmp.eq.s32.totalorder %s34, 0
      %p131 = por %p129, %p130
      %s132 = ssub.s32 %s28, %s35
      %p133 = scmp.eq.s32.totalorder %s132, 0
      %s135 = sadd.s32 %s134, 1
      %s136 = scalar_select %p133, %s134, %s135
      %p139 = pneg %p133
      %p140 = scmp.eq.s32.totalorder %s28, 1
      %p141 = por %p139, %p140
      %p142 = scmp.ne.s32.totalorder %s134, %s137
      %p143 = scmp.eq.s32.totalorder %s28, 0
      %p144 = por %p142, %p143
      %p145 = scmp.ne.s32.totalorder %s134, %s137
      %p146 = scmp.eq.s32.totalorder %s33, 1
      %p147 = por %p145, %p146
      %p148 = scmp.ne.s32.totalorder %s137, %s138
      %p149 = scmp.eq.s32.totalorder %s33, 0
      %p150 = por %p148, %p149
      %p151 = scmp.ne.s32.totalorder %s137, %s138
      %p152 = scmp.eq.s32.totalorder %s34, 1
      %p153 = por %p151, %p152
      %p155 = scmp.ne.s32.totalorder %s138, %s154
      %p156 = scmp.eq.s32.totalorder %s34, 0
      %p157 = por %p155, %p156
      %p158 = scmp.le.s32.totalorder 1, %s28
      %p159 = scmp.lt.s32.totalorder %s28, 3
      %p160 = pnand %p158, %p159
      %p161 = pneg %p160
      // Predicated region
      $region9: #{tpu_custom_call.1} parent=5 // pred_check
        _
      $region10: #{tpu_custom_call.1} parent=5 // pred_check_branch
        %163 = sbr.rel (%p160) target = $region12
      $region11: #{tpu_custom_call.1} parent=5 // pred_region
        %s164 = ssub.s32 %s28, 1
        // Predicated region
        $region13: #{tpu_custom_call.1} parent=11 // pred_check
          %p165 = pneg %p103
        $region14: #{tpu_custom_call.1} parent=11 // pred_check_branch
          %167 = sbr.rel (%p165) target = $region16
        $region15: #{tpu_custom_call.1} parent=11 // pred_region
          _
        $region16: #{tpu_custom_call.1} parent=11 // pred_fallthru
          _
        // Predicated region
        $region17: #{tpu_custom_call.1} parent=11 // pred_check
          %p168 = pneg %p124
        $region18: #{tpu_custom_call.1} parent=11 // pred_check_branch
          %170 = sbr.rel (%p168) target = $region20
        $region19: #{tpu_custom_call.1} parent=11 // pred_region
          %172 = vsyncadd [#allocation8], 0
          %s174 = sshll.u32 %s4, 4
          %s175 = int_to_ptr.hbm [resolvable:$true] %s174
          %s176 = sshll.u32 [#allocation9], 4
          %s177 = int_to_ptr.vmem [resolvable:$true] %s176
          %179 = dma.hbm_to_vmem [thread:$0]  %s175, 32, %s177, [#allocation8]
        $region20: #{tpu_custom_call.1} parent=11 // pred_fallthru
          _
      $region12: #{tpu_custom_call.1} parent=5 // pred_fallthru
        _
      %p180 = scmp.lt.s32.totalorder %s28, 2
      // Predicated region
      $region21: #{tpu_custom_call.1} parent=5 // pred_check
        %p181 = pneg %p180
      $region22: #{tpu_custom_call.1} parent=5 // pred_check_branch
        %183 = sbr.rel (%p181) target = $region24
      $region23: #{tpu_custom_call.1} parent=5 // pred_region
        // Predicated region
        $region25: #{tpu_custom_call.1} parent=23 // pred_check
          %p184 = pneg %p48
        $region26: #{tpu_custom_call.1} parent=23 // pred_check_branch
          %186 = sbr.rel (%p184) target = $region28
        $region27: #{tpu_custom_call.1} parent=23 // pred_region
          %s187 = sand.u32 %s38, 1
          %s188 = scalar_lea.sflag [#allocation5], %s187
          %s189 = sand.u32 %s38, 1
          %s190 = smul.addr %s189, 256
          %s191 = scalar_lea.vmem [#allocation4], %s190
          %s192 = smul.u32 32, %s28
          %194 = vsyncadd %s188, 0
          %s195 = smul.addr %s192, 2
          %s196 = smul.addr %s195, 4
          %s197 = scalar_lea.hbm %s1, %s196
          %s198 = sshll.u32 %s197, 4
          %s199 = int_to_ptr.hbm [resolvable:$true] %s198
          %s200 = sshll.u32 %s191, 4
          %s201 = int_to_ptr.vmem [resolvable:$true] %s200
          %206 = dma.hbm_to_vmem [thread:$0]  %s199, 4096, %s201, %s188, 128, 128, 8
        $region28: #{tpu_custom_call.1} parent=23 // pred_fallthru
          _
        // Predicated region
        $region29: #{tpu_custom_call.1} parent=23 // pred_check
          %p207 = pneg %p76
        $region30: #{tpu_custom_call.1} parent=23 // pred_check_branch
          %209 = sbr.rel (%p207) target = $region32
        $region31: #{tpu_custom_call.1} parent=23 // pred_region
          %s210 = sand.u32 %s28, 1
          %s211 = scalar_lea.sflag [#allocation8], %s210
          %s212 = sand.u32 %s66, 1
          %s213 = smul.addr %s212, 256
          %s214 = scalar_lea.vmem [#allocation7], %s213
          %s215 = sld [smem:[#allocation3 + %s28]]
          %217 = vsyncadd %s211, 0
          %s218 = smul.addr %s215, 64
          %s219 = smul.addr %s218, 4
          %s220 = scalar_lea.hbm %s2, %s219
          %s221 = sshll.u32 %s220, 4
          %s222 = int_to_ptr.hbm [resolvable:$true] %s221
          %s223 = sshll.u32 %s214, 4
          %s224 = int_to_ptr.vmem [resolvable:$true] %s223
          %229 = dma.hbm_to_vmem [thread:$0]  %s222, 4096, %s224, %s211, 128, 128, 8
        $region32: #{tpu_custom_call.1} parent=23 // pred_fallthru
          _
      $region24: #{tpu_custom_call.1} parent=5 // pred_fallthru
        _
      %p230 = scmp.le.s32.totalorder 1, %s28
      %p231 = scmp.lt.s32.totalorder %s28, 3
      %p232 = pnand %p230, %p231
      %p233 = pneg %p232
      // Predicated region
      $region33: #{tpu_custom_call.1} parent=5 // pred_check
        _
      $region34: #{tpu_custom_call.1} parent=5 // pred_check_branch
        %235 = sbr.rel (%p232) target = $region36
      $region35: #{tpu_custom_call.1} parent=5 // pred_region
        %s236 = ssub.s32 %s28, 1
        %s237 = sand.u32 %s41, 1
        %s238 = scalar_lea.sflag [#allocation5], %s237
        %s239 = sand.u32 %s41, 1
        %s240 = smul.addr %s239, 256
        %s241 = scalar_lea.vmem [#allocation4], %s240
        // Predicated region
        $region37: #{tpu_custom_call.1} parent=35 // pred_check
          %p242 = pneg %p54
        $region38: #{tpu_custom_call.1} parent=35 // pred_check_branch
          %244 = sbr.rel (%p242) target = $region40
        $region39: #{tpu_custom_call.1} parent=35 // pred_region
          %246 = dma.done %s238, 4096
        $region40: #{tpu_custom_call.1} parent=35 // pred_fallthru
          _
        %s247 = sand.u32 %s33, 1
        %s248 = scalar_lea.sflag [#allocation8], %s247
        %s249 = sand.u32 %s69, 1
        %s250 = smul.addr %s249, 256
        %s251 = scalar_lea.vmem [#allocation7], %s250
        // Predicated region
        $region41: #{tpu_custom_call.1} parent=35 // pred_check
          %p252 = pneg %p82
        $region42: #{tpu_custom_call.1} parent=35 // pred_check_branch
          %254 = sbr.rel (%p252) target = $region44
        $region43: #{tpu_custom_call.1} parent=35 // pred_region
          %256 = dma.done %s248, 4096
        $region44: #{tpu_custom_call.1} parent=35 // pred_fallthru
          _
        // Predicated region
        $region45: #{tpu_custom_call.1} parent=35 // pred_check
          %p257 = pneg %p124
        $region46: #{tpu_custom_call.1} parent=35 // pred_check_branch
          %259 = sbr.rel (%p257) target = $region48
        $region47: #{tpu_custom_call.1} parent=35 // pred_region
          %261 = dma.done [#allocation8], 32
        $region48: #{tpu_custom_call.1} parent=35 // pred_fallthru
          _
        %s262 = sand.u32 %s41, 1
        %s263 = scalar_lea.sflag [#allocation5], %s262
        %s264 = sand.u32 %s41, 1
        %s265 = smul.addr %s264, 256
        %s266 = scalar_lea.vmem [#allocation4], %s265
        %p267 = pneg %p54
        %p268 = pneg %p51
        %s269 = sand.u32 %s33, 1
        %s270 = scalar_lea.sflag [#allocation8], %s269
        %s271 = sand.u32 %s69, 1
        %s272 = smul.addr %s271, 256
        %s273 = scalar_lea.vmem [#allocation7], %s272
        %p274 = pneg %p82
        %p275 = pneg %p79
        %p276 = pneg %p103
        %p277 = pneg %p100
        %p278 = pneg %p124
        %p279 = pneg %p121
        %p280 = pneg %p150
        %p281 = pneg %p147
        %s282 = sand.u32 %s137, 1
        %s283 = scalar_lea.sflag [#allocation6], %s282
        %s284 = sand.u32 %s137, 1
        %s285 = smul.addr %s284, 256
        %s286 = scalar_lea.vmem [#allocation10], %s285
        %s287 = smul.u32 32, %s33
        %s288 = sld [smem:[#allocation3 + %s33]]
        %s289 = smul.u32 32, %s33
        %v290 = vld [vmem:[%s241] sm:$0xff]
        %v291 = vld [vmem:[%s241 + $0x8] sm:$0xff]
        %v292 = vld [vmem:[%s241 + $0x10] sm:$0xff]
        %v293 = vld [vmem:[%s241 + $0x18] sm:$0xff]
        %v294 = vld [vmem:[%s241 + $0x20] sm:$0xff]
        %v295 = vld [vmem:[%s241 + $0x28] sm:$0xff]
        %v296 = vld [vmem:[%s241 + $0x30] sm:$0xff]
        %v297 = vld [vmem:[%s241 + $0x38] sm:$0xff]
        %v298 = vld [vmem:[%s241 + $0x40] sm:$0xff]
        %v299 = vld [vmem:[%s241 + $0x48] sm:$0xff]
        %v300 = vld [vmem:[%s241 + $0x50] sm:$0xff]
        %v301 = vld [vmem:[%s241 + $0x58] sm:$0xff]
        %v302 = vld [vmem:[%s241 + $0x60] sm:$0xff]
        %v303 = vld [vmem:[%s241 + $0x68] sm:$0xff]
        %v304 = vld [vmem:[%s241 + $0x70] sm:$0xff]
        %v305 = vld [vmem:[%s241 + $0x78] sm:$0xff]
        %v306 = vld [vmem:[%s241 + $0x80] sm:$0xff]
        %v307 = vld [vmem:[%s241 + $0x88] sm:$0xff]
        %v308 = vld [vmem:[%s241 + $0x90] sm:$0xff]
        %v309 = vld [vmem:[%s241 + $0x98] sm:$0xff]
        %v310 = vld [vmem:[%s241 + $0xa0] sm:$0xff]
        %v311 = vld [vmem:[%s241 + $0xa8] sm:$0xff]
        %v312 = vld [vmem:[%s241 + $0xb0] sm:$0xff]
        %v313 = vld [vmem:[%s241 + $0xb8] sm:$0xff]
        %v314 = vld [vmem:[%s241 + $0xc0] sm:$0xff]
        %v315 = vld [vmem:[%s241 + $0xc8] sm:$0xff]
        %v316 = vld [vmem:[%s241 + $0xd0] sm:$0xff]
        %v317 = vld [vmem:[%s241 + $0xd8] sm:$0xff]
        %v318 = vld [vmem:[%s241 + $0xe0] sm:$0xff]
        %v319 = vld [vmem:[%s241 + $0xe8] sm:$0xff]
        %v320 = vld [vmem:[%s241 + $0xf0] sm:$0xff]
        %v321 = vld [vmem:[%s241 + $0xf8] sm:$0xff]
        %v322 = vld [vmem:[%s251] sm:$0xff]
        %v323 = vld [vmem:[%s251 + $0x8] sm:$0xff]
        %v324 = vld [vmem:[%s251 + $0x10] sm:$0xff]
        %v325 = vld [vmem:[%s251 + $0x18] sm:$0xff]
        %v326 = vld [vmem:[%s251 + $0x20] sm:$0xff]
        %v327 = vld [vmem:[%s251 + $0x28] sm:$0xff]
        %v328 = vld [vmem:[%s251 + $0x30] sm:$0xff]
        %v329 = vld [vmem:[%s251 + $0x38] sm:$0xff]
        %v330 = vld [vmem:[%s251 + $0x40] sm:$0xff]
        %v331 = vld [vmem:[%s251 + $0x48] sm:$0xff]
        %v332 = vld [vmem:[%s251 + $0x50] sm:$0xff]
        %v333 = vld [vmem:[%s251 + $0x58] sm:$0xff]
        %v334 = vld [vmem:[%s251 + $0x60] sm:$0xff]
        %v335 = vld [vmem:[%s251 + $0x68] sm:$0xff]
        %v336 = vld [vmem:[%s251 + $0x70] sm:$0xff]
        %v337 = vld [vmem:[%s251 + $0x78] sm:$0xff]
        %v338 = vld [vmem:[%s251 + $0x80] sm:$0xff]
        %v339 = vld [vmem:[%s251 + $0x88] sm:$0xff]
        %v340 = vld [vmem:[%s251 + $0x90] sm:$0xff]
        %v341 = vld [vmem:[%s251 + $0x98] sm:$0xff]
        %v342 = vld [vmem:[%s251 + $0xa0] sm:$0xff]
        %v343 = vld [vmem:[%s251 + $0xa8] sm:$0xff]
        %v344 = vld [vmem:[%s251 + $0xb0] sm:$0xff]
        %v345 = vld [vmem:[%s251 + $0xb8] sm:$0xff]
        %v346 = vld [vmem:[%s251 + $0xc0] sm:$0xff]
        %v347 = vld [vmem:[%s251 + $0xc8] sm:$0xff]
        %v348 = vld [vmem:[%s251 + $0xd0] sm:$0xff]
        %v349 = vld [vmem:[%s251 + $0xd8] sm:$0xff]
        %v350 = vld [vmem:[%s251 + $0xe0] sm:$0xff]
        %v351 = vld [vmem:[%s251 + $0xe8] sm:$0xff]
        %v352 = vld [vmem:[%s251 + $0xf0] sm:$0xff]
        %v353 = vld [vmem:[%s251 + $0xf8] sm:$0xff]
        %v386 = vunpack.c.l.b16 %v290
        %v387 = vunpack.c.h.b16 %v290
        %v388 = vunpack.c.l.b16 %v291
        %v389 = vunpack.c.h.b16 %v291
        %v390 = vunpack.c.l.b16 %v292
        %v391 = vunpack.c.h.b16 %v292
        %v392 = vunpack.c.l.b16 %v293
        %v393 = vunpack.c.h.b16 %v293
        %v394 = vunpack.c.l.b16 %v294
        %v395 = vunpack.c.h.b16 %v294
        %v396 = vunpack.c.l.b16 %v295
        %v397 = vunpack.c.h.b16 %v295
        %v398 = vunpack.c.l.b16 %v296
        %v399 = vunpack.c.h.b16 %v296
        %v400 = vunpack.c.l.b16 %v297
        %v401 = vunpack.c.h.b16 %v297
        %v402 = vunpack.c.l.b16 %v298
        %v403 = vunpack.c.h.b16 %v298
        %v404 = vunpack.c.l.b16 %v299
        %v405 = vunpack.c.h.b16 %v299
        %v406 = vunpack.c.l.b16 %v300
        %v407 = vunpack.c.h.b16 %v300
        %v408 = vunpack.c.l.b16 %v301
        %v409 = vunpack.c.h.b16 %v301
        %v410 = vunpack.c.l.b16 %v302
        %v411 = vunpack.c.h.b16 %v302
        %v412 = vunpack.c.l.b16 %v303
        %v413 = vunpack.c.h.b16 %v303
        %v414 = vunpack.c.l.b16 %v304
        %v415 = vunpack.c.h.b16 %v304
        %v416 = vunpack.c.l.b16 %v305
        %v417 = vunpack.c.h.b16 %v305
        %v418 = vunpack.c.l.b16 %v306
        %v419 = vunpack.c.h.b16 %v306
        %v420 = vunpack.c.l.b16 %v307
        %v421 = vunpack.c.h.b16 %v307
        %v422 = vunpack.c.l.b16 %v308
        %v423 = vunpack.c.h.b16 %v308
        %v424 = vunpack.c.l.b16 %v309
        %v425 = vunpack.c.h.b16 %v309
        %v426 = vunpack.c.l.b16 %v310
        %v427 = vunpack.c.h.b16 %v310
        %v428 = vunpack.c.l.b16 %v311
        %v429 = vunpack.c.h.b16 %v311
        %v430 = vunpack.c.l.b16 %v312
        %v431 = vunpack.c.h.b16 %v312
        %v432 = vunpack.c.l.b16 %v313
        %v433 = vunpack.c.h.b16 %v313
        %v434 = vunpack.c.l.b16 %v314
        %v435 = vunpack.c.h.b16 %v314
        %v436 = vunpack.c.l.b16 %v315
        %v437 = vunpack.c.h.b16 %v315
        %v438 = vunpack.c.l.b16 %v316
        %v439 = vunpack.c.h.b16 %v316
        %v440 = vunpack.c.l.b16 %v317
        %v441 = vunpack.c.h.b16 %v317
        %v442 = vunpack.c.l.b16 %v318
        %v443 = vunpack.c.h.b16 %v318
        %v444 = vunpack.c.l.b16 %v319
        %v445 = vunpack.c.h.b16 %v319
        %v446 = vunpack.c.l.b16 %v320
        %v447 = vunpack.c.h.b16 %v320
        %v448 = vunpack.c.l.b16 %v321
        %v449 = vunpack.c.h.b16 %v321
        %v450 = vpack.c.b16 %v388, %v386
        %v451 = vpack.c.b16 %v389, %v387
        %v452 = vpack.c.b16 %v392, %v390
        %v453 = vpack.c.b16 %v393, %v391
        %v454 = vpack.c.b16 %v396, %v394
        %v455 = vpack.c.b16 %v397, %v395
        %v456 = vpack.c.b16 %v400, %v398
        %v457 = vpack.c.b16 %v401, %v399
        %v458 = vpack.c.b16 %v404, %v402
        %v459 = vpack.c.b16 %v405, %v403
        %v460 = vpack.c.b16 %v408, %v406
        %v461 = vpack.c.b16 %v409, %v407
        %v462 = vpack.c.b16 %v412, %v410
        %v463 = vpack.c.b16 %v413, %v411
        %v464 = vpack.c.b16 %v416, %v414
        %v465 = vpack.c.b16 %v417, %v415
        %v466 = vpack.c.b16 %v420, %v418
        %v467 = vpack.c.b16 %v421, %v419
        %v468 = vpack.c.b16 %v424, %v422
        %v469 = vpack.c.b16 %v425, %v423
        %v470 = vpack.c.b16 %v428, %v426
        %v471 = vpack.c.b16 %v429, %v427
        %v472 = vpack.c.b16 %v432, %v430
        %v473 = vpack.c.b16 %v433, %v431
        %v474 = vpack.c.b16 %v436, %v434
        %v475 = vpack.c.b16 %v437, %v435
        %v476 = vpack.c.b16 %v440, %v438
        %v477 = vpack.c.b16 %v441, %v439
        %v478 = vpack.c.b16 %v444, %v442
        %v479 = vpack.c.b16 %v445, %v443
        %v480 = vpack.c.b16 %v448, %v446
        %v481 = vpack.c.b16 %v449, %v447
        %v546 = vunpack.c.l.b16 %v322
        %v547 = vunpack.c.h.b16 %v322
        %v548 = vunpack.c.l.b16 %v323
        %v549 = vunpack.c.h.b16 %v323
        %v550 = vunpack.c.l.b16 %v324
        %v551 = vunpack.c.h.b16 %v324
        %v552 = vunpack.c.l.b16 %v325
        %v553 = vunpack.c.h.b16 %v325
        %v554 = vunpack.c.l.b16 %v326
        %v555 = vunpack.c.h.b16 %v326
        %v556 = vunpack.c.l.b16 %v327
        %v557 = vunpack.c.h.b16 %v327
        %v558 = vunpack.c.l.b16 %v328
        %v559 = vunpack.c.h.b16 %v328
        %v560 = vunpack.c.l.b16 %v329
        %v561 = vunpack.c.h.b16 %v329
        %v562 = vunpack.c.l.b16 %v330
        %v563 = vunpack.c.h.b16 %v330
        %v564 = vunpack.c.l.b16 %v331
        %v565 = vunpack.c.h.b16 %v331
        %v566 = vunpack.c.l.b16 %v332
        %v567 = vunpack.c.h.b16 %v332
        %v568 = vunpack.c.l.b16 %v333
        %v569 = vunpack.c.h.b16 %v333
        %v570 = vunpack.c.l.b16 %v334
        %v571 = vunpack.c.h.b16 %v334
        %v572 = vunpack.c.l.b16 %v335
        %v573 = vunpack.c.h.b16 %v335
        %v574 = vunpack.c.l.b16 %v336
        %v575 = vunpack.c.h.b16 %v336
        %v576 = vunpack.c.l.b16 %v337
        %v577 = vunpack.c.h.b16 %v337
        %v578 = vunpack.c.l.b16 %v338
        %v579 = vunpack.c.h.b16 %v338
        %v580 = vunpack.c.l.b16 %v339
        %v581 = vunpack.c.h.b16 %v339
        %v582 = vunpack.c.l.b16 %v340
        %v583 = vunpack.c.h.b16 %v340
        %v584 = vunpack.c.l.b16 %v341
        %v585 = vunpack.c.h.b16 %v341
        %v586 = vunpack.c.l.b16 %v342
        %v587 = vunpack.c.h.b16 %v342
        %v588 = vunpack.c.l.b16 %v343
        %v589 = vunpack.c.h.b16 %v343
        %v590 = vunpack.c.l.b16 %v344
        %v591 = vunpack.c.h.b16 %v344
        %v592 = vunpack.c.l.b16 %v345
        %v593 = vunpack.c.h.b16 %v345
        %v594 = vunpack.c.l.b16 %v346
        %v595 = vunpack.c.h.b16 %v346
        %v596 = vunpack.c.l.b16 %v347
        %v597 = vunpack.c.h.b16 %v347
        %v598 = vunpack.c.l.b16 %v348
        %v599 = vunpack.c.h.b16 %v348
        %v600 = vunpack.c.l.b16 %v349
        %v601 = vunpack.c.h.b16 %v349
        %v602 = vunpack.c.l.b16 %v350
        %v603 = vunpack.c.h.b16 %v350
        %v604 = vunpack.c.l.b16 %v351
        %v605 = vunpack.c.h.b16 %v351
        %v606 = vunpack.c.l.b16 %v352
        %v607 = vunpack.c.h.b16 %v352
        %v608 = vunpack.c.l.b16 %v353
        %v609 = vunpack.c.h.b16 %v353
        %v610 = vpack.c.b16 %v548, %v546
        %v611 = vpack.c.b16 %v549, %v547
        %v612 = vpack.c.b16 %v552, %v550
        %v613 = vpack.c.b16 %v553, %v551
        %v614 = vpack.c.b16 %v556, %v554
        %v615 = vpack.c.b16 %v557, %v555
        %v616 = vpack.c.b16 %v560, %v558
        %v617 = vpack.c.b16 %v561, %v559
        %v618 = vpack.c.b16 %v564, %v562
        %v619 = vpack.c.b16 %v565, %v563
        %v620 = vpack.c.b16 %v568, %v566
        %v621 = vpack.c.b16 %v569, %v567
        %v622 = vpack.c.b16 %v572, %v570
        %v623 = vpack.c.b16 %v573, %v571
        %v624 = vpack.c.b16 %v576, %v574
        %v625 = vpack.c.b16 %v577, %v575
        %v626 = vpack.c.b16 %v580, %v578
        %v627 = vpack.c.b16 %v581, %v579
        %v628 = vpack.c.b16 %v584, %v582
        %v629 = vpack.c.b16 %v585, %v583
        %v630 = vpack.c.b16 %v588, %v586
        %v631 = vpack.c.b16 %v589, %v587
        %v632 = vpack.c.b16 %v592, %v590
        %v633 = vpack.c.b16 %v593, %v591
        %v634 = vpack.c.b16 %v596, %v594
        %v635 = vpack.c.b16 %v597, %v595
        %v636 = vpack.c.b16 %v600, %v598
        %v637 = vpack.c.b16 %v601, %v599
        %v638 = vpack.c.b16 %v604, %v602
        %v639 = vpack.c.b16 %v605, %v603
        %v640 = vpack.c.b16 %v608, %v606
        %v641 = vpack.c.b16 %v609, %v607
        %674 = vmatpush.bf16.msra.mxu0 %v624
        %675 = vmatpush.bf16.msra.mxu0 %v622
        %676 = vmatpush.bf16.msra.mxu0 %v620
        %677 = vmatpush.bf16.msra.mxu0 %v618
        %678 = vmatpush.bf16.msra.mxu0 %v616
        %679 = vmatpush.bf16.msra.mxu0 %v614
        %680 = vmatpush.bf16.msra.mxu0 %v612
        %681 = vmatpush.bf16.msra.mxu0 %v610
        %682 = vmatmul.bf16.gmra.mxu0 %v450
        %v683 = vpop.f32.mrf.mxu0
        %v684 = vadd.f32 0.0, %v683
        %v685 = vpop.f32.mrf.mxu0
        %v686 = vadd.f32 0.0, %v685
        %687 = vmatmul.bf16.gmra.mxu0 %v452
        %v688 = vpop.f32.mrf.mxu0
        %v689 = vadd.f32 0.0, %v688
        %v690 = vpop.f32.mrf.mxu0
        %v691 = vadd.f32 0.0, %v690
        %692 = vmatmul.bf16.gmra.mxu0 %v454
        %v693 = vpop.f32.mrf.mxu0
        %v694 = vadd.f32 0.0, %v693
        %v695 = vpop.f32.mrf.mxu0
        %v696 = vadd.f32 0.0, %v695
        %697 = vmatmul.bf16.gmra.mxu0 %v456
        %v698 = vpop.f32.mrf.mxu0
        %v699 = vadd.f32 0.0, %v698
        %v700 = vpop.f32.mrf.mxu0
        %v701 = vadd.f32 0.0, %v700
        %702 = vmatmul.bf16.gmra.mxu0 %v458
        %v703 = vpop.f32.mrf.mxu0
        %v704 = vadd.f32 0.0, %v703
        %v705 = vpop.f32.mrf.mxu0
        %v706 = vadd.f32 0.0, %v705
        %707 = vmatmul.bf16.gmra.mxu0 %v460
        %v708 = vpop.f32.mrf.mxu0
        %v709 = vadd.f32 0.0, %v708
        %v710 = vpop.f32.mrf.mxu0
        %v711 = vadd.f32 0.0, %v710
        %712 = vmatmul.bf16.gmra.mxu0 %v462
        %v713 = vpop.f32.mrf.mxu0
        %v714 = vadd.f32 0.0, %v713
        %v715 = vpop.f32.mrf.mxu0
        %v716 = vadd.f32 0.0, %v715
        %717 = vmatmul.bf16.gmra.mxu0 %v464
        %v718 = vpop.f32.mrf.mxu0
        %v719 = vadd.f32 0.0, %v718
        %v720 = vpop.f32.mrf.mxu0
        %v721 = vadd.f32 0.0, %v720
        %722 = vmatmul.bf16.gmra.mxu0 %v466
        %v723 = vpop.f32.mrf.mxu0
        %v724 = vadd.f32 0.0, %v723
        %v725 = vpop.f32.mrf.mxu0
        %v726 = vadd.f32 0.0, %v725
        %727 = vmatmul.bf16.gmra.mxu0 %v468
        %v728 = vpop.f32.mrf.mxu0
        %v729 = vadd.f32 0.0, %v728
        %v730 = vpop.f32.mrf.mxu0
        %v731 = vadd.f32 0.0, %v730
        %732 = vmatmul.bf16.gmra.mxu0 %v470
        %v733 = vpop.f32.mrf.mxu0
        %v734 = vadd.f32 0.0, %v733
        %v735 = vpop.f32.mrf.mxu0
        %v736 = vadd.f32 0.0, %v735
        %737 = vmatmul.bf16.gmra.mxu0 %v472
        %v738 = vpop.f32.mrf.mxu0
        %v739 = vadd.f32 0.0, %v738
        %v740 = vpop.f32.mrf.mxu0
        %v741 = vadd.f32 0.0, %v740
        %742 = vmatmul.bf16.gmra.mxu0 %v474
        %v743 = vpop.f32.mrf.mxu0
        %v744 = vadd.f32 0.0, %v743
        %v745 = vpop.f32.mrf.mxu0
        %v746 = vadd.f32 0.0, %v745
        %747 = vmatmul.bf16.gmra.mxu0 %v476
        %v748 = vpop.f32.mrf.mxu0
        %v749 = vadd.f32 0.0, %v748
        %v750 = vpop.f32.mrf.mxu0
        %v751 = vadd.f32 0.0, %v750
        %752 = vmatmul.bf16.gmra.mxu0 %v478
        %v753 = vpop.f32.mrf.mxu0
        %v754 = vadd.f32 0.0, %v753
        %v755 = vpop.f32.mrf.mxu0
        %v756 = vadd.f32 0.0, %v755
        %757 = vmatmul.bf16.gmra.mxu0 %v480
        %v758 = vpop.f32.mrf.mxu0
        %v759 = vadd.f32 0.0, %v758
        %v760 = vpop.f32.mrf.mxu0
        %v761 = vadd.f32 0.0, %v760
        %762 = vdwg.mxu0
        %763 = vmatpush.bf16.msra.mxu0 %v640
        %764 = vmatpush.bf16.msra.mxu0 %v638
        %765 = vmatpush.bf16.msra.mxu0 %v636
        %766 = vmatpush.bf16.msra.mxu0 %v634
        %767 = vmatpush.bf16.msra.mxu0 %v632
        %768 = vmatpush.bf16.msra.mxu0 %v630
        %769 = vmatpush.bf16.msra.mxu0 %v628
        %770 = vmatpush.bf16.msra.mxu0 %v626
        %771 = vmatmul.bf16.gmra.mxu0 %v451
        %v772 = vpop.f32.mrf.mxu0
        %v773 = vadd.f32 %v684, %v772
        %v774 = vpop.f32.mrf.mxu0
        %v775 = vadd.f32 %v686, %v774
        %776 = vmatmul.bf16.gmra.mxu0 %v453
        %v777 = vpop.f32.mrf.mxu0
        %v778 = vadd.f32 %v689, %v777
        %v779 = vpop.f32.mrf.mxu0
        %v780 = vadd.f32 %v691, %v779
        %781 = vmatmul.bf16.gmra.mxu0 %v455
        %v782 = vpop.f32.mrf.mxu0
        %v783 = vadd.f32 %v694, %v782
        %v784 = vpop.f32.mrf.mxu0
        %v785 = vadd.f32 %v696, %v784
        %786 = vmatmul.bf16.gmra.mxu0 %v457
        %v787 = vpop.f32.mrf.mxu0
        %v788 = vadd.f32 %v699, %v787
        %v789 = vpop.f32.mrf.mxu0
        %v790 = vadd.f32 %v701, %v789
        %791 = vmatmul.bf16.gmra.mxu0 %v459
        %v792 = vpop.f32.mrf.mxu0
        %v793 = vadd.f32 %v704, %v792
        %v794 = vpop.f32.mrf.mxu0
        %v795 = vadd.f32 %v706, %v794
        %796 = vmatmul.bf16.gmra.mxu0 %v461
        %v797 = vpop.f32.mrf.mxu0
        %v798 = vadd.f32 %v709, %v797
        %v799 = vpop.f32.mrf.mxu0
        %v800 = vadd.f32 %v711, %v799
        %801 = vmatmul.bf16.gmra.mxu0 %v463
        %v802 = vpop.f32.mrf.mxu0
        %v803 = vadd.f32 %v714, %v802
        %v804 = vpop.f32.mrf.mxu0
        %v805 = vadd.f32 %v716, %v804
        %806 = vmatmul.bf16.gmra.mxu0 %v465
        %v807 = vpop.f32.mrf.mxu0
        %v808 = vadd.f32 %v719, %v807
        %v809 = vpop.f32.mrf.mxu0
        %v810 = vadd.f32 %v721, %v809
        %811 = vmatmul.bf16.gmra.mxu0 %v467
        %v812 = vpop.f32.mrf.mxu0
        %v813 = vadd.f32 %v724, %v812
        %v814 = vpop.f32.mrf.mxu0
        %v815 = vadd.f32 %v726, %v814
        %816 = vmatmul.bf16.gmra.mxu0 %v469
        %v817 = vpop.f32.mrf.mxu0
        %v818 = vadd.f32 %v729, %v817
        %v819 = vpop.f32.mrf.mxu0
        %v820 = vadd.f32 %v731, %v819
        %821 = vmatmul.bf16.gmra.mxu0 %v471
        %v822 = vpop.f32.mrf.mxu0
        %v823 = vadd.f32 %v734, %v822
        %v824 = vpop.f32.mrf.mxu0
        %v825 = vadd.f32 %v736, %v824
        %826 = vmatmul.bf16.gmra.mxu0 %v473
        %v827 = vpop.f32.mrf.mxu0
        %v828 = vadd.f32 %v739, %v827
        %v829 = vpop.f32.mrf.mxu0
        %v830 = vadd.f32 %v741, %v829
        %831 = vmatmul.bf16.gmra.mxu0 %v475
        %v832 = vpop.f32.mrf.mxu0
        %v833 = vadd.f32 %v744, %v832
        %v834 = vpop.f32.mrf.mxu0
        %v835 = vadd.f32 %v746, %v834
        %836 = vmatmul.bf16.gmra.mxu0 %v477
        %v837 = vpop.f32.mrf.mxu0
        %v838 = vadd.f32 %v749, %v837
        %v839 = vpop.f32.mrf.mxu0
        %v840 = vadd.f32 %v751, %v839
        %841 = vmatmul.bf16.gmra.mxu0 %v479
        %v842 = vpop.f32.mrf.mxu0
        %v843 = vadd.f32 %v754, %v842
        %v844 = vpop.f32.mrf.mxu0
        %v845 = vadd.f32 %v756, %v844
        %846 = vmatmul.bf16.gmra.mxu0 %v481
        %v847 = vpop.f32.mrf.mxu0
        %v848 = vadd.f32 %v759, %v847
        %v849 = vpop.f32.mrf.mxu0
        %v850 = vadd.f32 %v761, %v849
        %851 = vdwg.mxu0
        %852 = vmatpush.bf16.msra.mxu0 %v625
        %853 = vmatpush.bf16.msra.mxu0 %v623
        %854 = vmatpush.bf16.msra.mxu0 %v621
        %855 = vmatpush.bf16.msra.mxu0 %v619
        %856 = vmatpush.bf16.msra.mxu0 %v617
        %857 = vmatpush.bf16.msra.mxu0 %v615
        %858 = vmatpush.bf16.msra.mxu0 %v613
        %859 = vmatpush.bf16.msra.mxu0 %v611
        %860 = vmatmul.bf16.gmra.mxu0 %v450
        %v861 = vpop.f32.mrf.mxu0
        %v862 = vadd.f32 0.0, %v861
        %v863 = vpop.f32.mrf.mxu0
        %v864 = vadd.f32 0.0, %v863
        %865 = vmatmul.bf16.gmra.mxu0 %v452
        %v866 = vpop.f32.mrf.mxu0
        %v867 = vadd.f32 0.0, %v866
        %v868 = vpop.f32.mrf.mxu0
        %v869 = vadd.f32 0.0, %v868
        %870 = vmatmul.bf16.gmra.mxu0 %v454
        %v871 = vpop.f32.mrf.mxu0
        %v872 = vadd.f32 0.0, %v871
        %v873 = vpop.f32.mrf.mxu0
        %v874 = vadd.f32 0.0, %v873
        %875 = vmatmul.bf16.gmra.mxu0 %v456
        %v876 = vpop.f32.mrf.mxu0
        %v877 = vadd.f32 0.0, %v876
        %v878 = vpop.f32.mrf.mxu0
        %v879 = vadd.f32 0.0, %v878
        %880 = vmatmul.bf16.gmra.mxu0 %v458
        %v881 = vpop.f32.mrf.mxu0
        %v882 = vadd.f32 0.0, %v881
        %v883 = vpop.f32.mrf.mxu0
        %v884 = vadd.f32 0.0, %v883
        %885 = vmatmul.bf16.gmra.mxu0 %v460
        %v886 = vpop.f32.mrf.mxu0
        %v887 = vadd.f32 0.0, %v886
        %v888 = vpop.f32.mrf.mxu0
        %v889 = vadd.f32 0.0, %v888
        %890 = vmatmul.bf16.gmra.mxu0 %v462
        %v891 = vpop.f32.mrf.mxu0
        %v892 = vadd.f32 0.0, %v891
        %v893 = vpop.f32.mrf.mxu0
        %v894 = vadd.f32 0.0, %v893
        %895 = vmatmul.bf16.gmra.mxu0 %v464
        %v896 = vpop.f32.mrf.mxu0
        %v897 = vadd.f32 0.0, %v896
        %v898 = vpop.f32.mrf.mxu0
        %v899 = vadd.f32 0.0, %v898
        %900 = vmatmul.bf16.gmra.mxu0 %v466
        %v901 = vpop.f32.mrf.mxu0
        %v902 = vadd.f32 0.0, %v901
        %v903 = vpop.f32.mrf.mxu0
        %v904 = vadd.f32 0.0, %v903
        %905 = vmatmul.bf16.gmra.mxu0 %v468
        %v906 = vpop.f32.mrf.mxu0
        %v907 = vadd.f32 0.0, %v906
        %v908 = vpop.f32.mrf.mxu0
        %v909 = vadd.f32 0.0, %v908
        %910 = vmatmul.bf16.gmra.mxu0 %v470
        %v911 = vpop.f32.mrf.mxu0
        %v912 = vadd.f32 0.0, %v911
        %v913 = vpop.f32.mrf.mxu0
        %v914 = vadd.f32 0.0, %v913
        %915 = vmatmul.bf16.gmra.mxu0 %v472
        %v916 = vpop.f32.mrf.mxu0
        %v917 = vadd.f32 0.0, %v916
        %v918 = vpop.f32.mrf.mxu0
        %v919 = vadd.f32 0.0, %v918
        %920 = vmatmul.bf16.gmra.mxu0 %v474
        %v921 = vpop.f32.mrf.mxu0
        %v922 = vadd.f32 0.0, %v921
        %v923 = vpop.f32.mrf.mxu0
        %v924 = vadd.f32 0.0, %v923
        %925 = vmatmul.bf16.gmra.mxu0 %v476
        %v926 = vpop.f32.mrf.mxu0
        %v927 = vadd.f32 0.0, %v926
        %v928 = vpop.f32.mrf.mxu0
        %v929 = vadd.f32 0.0, %v928
        %930 = vmatmul.bf16.gmra.mxu0 %v478
        %v931 = vpop.f32.mrf.mxu0
        %v932 = vadd.f32 0.0, %v931
        %v933 = vpop.f32.mrf.mxu0
        %v934 = vadd.f32 0.0, %v933
        %935 = vmatmul.bf16.gmra.mxu0 %v480
        %v936 = vpop.f32.mrf.mxu0
        %v937 = vadd.f32 0.0, %v936
        %v938 = vpop.f32.mrf.mxu0
        %v939 = vadd.f32 0.0, %v938
        %940 = vdwg.mxu0
        %941 = vmatpush.bf16.msra.mxu0 %v641
        %942 = vmatpush.bf16.msra.mxu0 %v639
        %943 = vmatpush.bf16.msra.mxu0 %v637
        %944 = vmatpush.bf16.msra.mxu0 %v635
        %945 = vmatpush.bf16.msra.mxu0 %v633
        %946 = vmatpush.bf16.msra.mxu0 %v631
        %947 = vmatpush.bf16.msra.mxu0 %v629
        %948 = vmatpush.bf16.msra.mxu0 %v627
        %949 = vmatmul.bf16.gmra.mxu0 %v451
        %v950 = vpop.f32.mrf.mxu0
        %v951 = vadd.f32 %v862, %v950
        %v952 = vpop.f32.mrf.mxu0
        %v953 = vadd.f32 %v864, %v952
        %954 = vmatmul.bf16.gmra.mxu0 %v453
        %v955 = vpop.f32.mrf.mxu0
        %v956 = vadd.f32 %v867, %v955
        %v957 = vpop.f32.mrf.mxu0
        %v958 = vadd.f32 %v869, %v957
        %959 = vmatmul.bf16.gmra.mxu0 %v455
        %v960 = vpop.f32.mrf.mxu0
        %v961 = vadd.f32 %v872, %v960
        %v962 = vpop.f32.mrf.mxu0
        %v963 = vadd.f32 %v874, %v962
        %964 = vmatmul.bf16.gmra.mxu0 %v457
        %v965 = vpop.f32.mrf.mxu0
        %v966 = vadd.f32 %v877, %v965
        %v967 = vpop.f32.mrf.mxu0
        %v968 = vadd.f32 %v879, %v967
        %969 = vmatmul.bf16.gmra.mxu0 %v459
        %v970 = vpop.f32.mrf.mxu0
        %v971 = vadd.f32 %v882, %v970
        %v972 = vpop.f32.mrf.mxu0
        %v973 = vadd.f32 %v884, %v972
        %974 = vmatmul.bf16.gmra.mxu0 %v461
        %v975 = vpop.f32.mrf.mxu0
        %v976 = vadd.f32 %v887, %v975
        %v977 = vpop.f32.mrf.mxu0
        %v978 = vadd.f32 %v889, %v977
        %979 = vmatmul.bf16.gmra.mxu0 %v463
        %v980 = vpop.f32.mrf.mxu0
        %v981 = vadd.f32 %v892, %v980
        %v982 = vpop.f32.mrf.mxu0
        %v983 = vadd.f32 %v894, %v982
        %984 = vmatmul.bf16.gmra.mxu0 %v465
        %v985 = vpop.f32.mrf.mxu0
        %v986 = vadd.f32 %v897, %v985
        %v987 = vpop.f32.mrf.mxu0
        %v988 = vadd.f32 %v899, %v987
        %989 = vmatmul.bf16.gmra.mxu0 %v467
        %v990 = vpop.f32.mrf.mxu0
        %v991 = vadd.f32 %v902, %v990
        %v992 = vpop.f32.mrf.mxu0
        %v993 = vadd.f32 %v904, %v992
        %994 = vmatmul.bf16.gmra.mxu0 %v469
        %v995 = vpop.f32.mrf.mxu0
        %v996 = vadd.f32 %v907, %v995
        %v997 = vpop.f32.mrf.mxu0
        %v998 = vadd.f32 %v909, %v997
        %999 = vmatmul.bf16.gmra.mxu0 %v471
        %v1000 = vpop.f32.mrf.mxu0
        %v1001 = vadd.f32 %v912, %v1000
        %v1002 = vpop.f32.mrf.mxu0
        %v1003 = vadd.f32 %v914, %v1002
        %1004 = vmatmul.bf16.gmra.mxu0 %v473
        %v1005 = vpop.f32.mrf.mxu0
        %v1006 = vadd.f32 %v917, %v1005
        %v1007 = vpop.f32.mrf.mxu0
        %v1008 = vadd.f32 %v919, %v1007
        %1009 = vmatmul.bf16.gmra.mxu0 %v475
        %v1010 = vpop.f32.mrf.mxu0
        %v1011 = vadd.f32 %v922, %v1010
        %v1012 = vpop.f32.mrf.mxu0
        %v1013 = vadd.f32 %v924, %v1012
        %1014 = vmatmul.bf16.gmra.mxu0 %v477
        %v1015 = vpop.f32.mrf.mxu0
        %v1016 = vadd.f32 %v927, %v1015
        %v1017 = vpop.f32.mrf.mxu0
        %v1018 = vadd.f32 %v929, %v1017
        %1019 = vmatmul.bf16.gmra.mxu0 %v479
        %v1020 = vpop.f32.mrf.mxu0
        %v1021 = vadd.f32 %v932, %v1020
        %v1022 = vpop.f32.mrf.mxu0
        %v1023 = vadd.f32 %v934, %v1022
        %1024 = vmatmul.bf16.gmra.mxu0 %v481
        %v1025 = vpop.f32.mrf.mxu0
        %v1026 = vadd.f32 %v937, %v1025
        %v1027 = vpop.f32.mrf.mxu0
        %v1028 = vadd.f32 %v939, %v1027
        %1029 = vdwg.mxu0
        %v1030 = vadd.f32 %v773, %v951
        %1031 = vadd.xlane.f32.xlu0 %v1030
        %v1032 = vpop.xlane.xlu0 %1031
        %v1033 = vadd.f32 %v775, %v953
        %1034 = vadd.xlane.f32.xlu0 %v1033
        %v1035 = vpop.xlane.xlu0 %1034
        %v1036 = vadd.f32 %v778, %v956
        %1037 = vadd.xlane.f32.xlu0 %v1036
        %v1038 = vpop.xlane.xlu0 %1037
        %v1039 = vadd.f32 %v780, %v958
        %1040 = vadd.xlane.f32.xlu0 %v1039
        %v1041 = vpop.xlane.xlu0 %1040
        %v1042 = vadd.f32 %v783, %v961
        %1043 = vadd.xlane.f32.xlu0 %v1042
        %v1044 = vpop.xlane.xlu0 %1043
        %v1045 = vadd.f32 %v785, %v963
        %1046 = vadd.xlane.f32.xlu0 %v1045
        %v1047 = vpop.xlane.xlu0 %1046
        %v1048 = vadd.f32 %v788, %v966
        %1049 = vadd.xlane.f32.xlu0 %v1048
        %v1050 = vpop.xlane.xlu0 %1049
        %v1051 = vadd.f32 %v790, %v968
        %1052 = vadd.xlane.f32.xlu0 %v1051
        %v1053 = vpop.xlane.xlu0 %1052
        %v1054 = vadd.f32 %v793, %v971
        %1055 = vadd.xlane.f32.xlu0 %v1054
        %v1056 = vpop.xlane.xlu0 %1055
        %v1057 = vadd.f32 %v795, %v973
        %1058 = vadd.xlane.f32.xlu0 %v1057
        %v1059 = vpop.xlane.xlu0 %1058
        %v1060 = vadd.f32 %v798, %v976
        %1061 = vadd.xlane.f32.xlu0 %v1060
        %v1062 = vpop.xlane.xlu0 %1061
        %v1063 = vadd.f32 %v800, %v978
        %1064 = vadd.xlane.f32.xlu0 %v1063
        %v1065 = vpop.xlane.xlu0 %1064
        %v1066 = vadd.f32 %v803, %v981
        %1067 = vadd.xlane.f32.xlu0 %v1066
        %v1068 = vpop.xlane.xlu0 %1067
        %v1069 = vadd.f32 %v805, %v983
        %1070 = vadd.xlane.f32.xlu0 %v1069
        %v1071 = vpop.xlane.xlu0 %1070
        %v1072 = vadd.f32 %v808, %v986
        %1073 = vadd.xlane.f32.xlu0 %v1072
        %v1074 = vpop.xlane.xlu0 %1073
        %v1075 = vadd.f32 %v810, %v988
        %1076 = vadd.xlane.f32.xlu0 %v1075
        %v1077 = vpop.xlane.xlu0 %1076
        %v1078 = vadd.f32 %v813, %v991
        %1079 = vadd.xlane.f32.xlu0 %v1078
        %v1080 = vpop.xlane.xlu0 %1079
        %v1081 = vadd.f32 %v815, %v993
        %1082 = vadd.xlane.f32.xlu0 %v1081
        %v1083 = vpop.xlane.xlu0 %1082
        %v1084 = vadd.f32 %v818, %v996
        %1085 = vadd.xlane.f32.xlu0 %v1084
        %v1086 = vpop.xlane.xlu0 %1085
        %v1087 = vadd.f32 %v820, %v998
        %1088 = vadd.xlane.f32.xlu0 %v1087
        %v1089 = vpop.xlane.xlu0 %1088
        %v1090 = vadd.f32 %v823, %v1001
        %1091 = vadd.xlane.f32.xlu0 %v1090
        %v1092 = vpop.xlane.xlu0 %1091
        %v1093 = vadd.f32 %v825, %v1003
        %1094 = vadd.xlane.f32.xlu0 %v1093
        %v1095 = vpop.xlane.xlu0 %1094
        %v1096 = vadd.f32 %v828, %v1006
        %1097 = vadd.xlane.f32.xlu0 %v1096
        %v1098 = vpop.xlane.xlu0 %1097
        %v1099 = vadd.f32 %v830, %v1008
        %1100 = vadd.xlane.f32.xlu0 %v1099
        %v1101 = vpop.xlane.xlu0 %1100
        %v1102 = vadd.f32 %v833, %v1011
        %1103 = vadd.xlane.f32.xlu0 %v1102
        %v1104 = vpop.xlane.xlu0 %1103
        %v1105 = vadd.f32 %v835, %v1013
        %1106 = vadd.xlane.f32.xlu0 %v1105
        %v1107 = vpop.xlane.xlu0 %1106
        %v1108 = vadd.f32 %v838, %v1016
        %1109 = vadd.xlane.f32.xlu0 %v1108
        %v1110 = vpop.xlane.xlu0 %1109
        %v1111 = vadd.f32 %v840, %v1018
        %1112 = vadd.xlane.f32.xlu0 %v1111
        %v1113 = vpop.xlane.xlu0 %1112
        %v1114 = vadd.f32 %v843, %v1021
        %1115 = vadd.xlane.f32.xlu0 %v1114
        %v1116 = vpop.xlane.xlu0 %1115
        %v1117 = vadd.f32 %v845, %v1023
        %1118 = vadd.xlane.f32.xlu0 %v1117
        %v1119 = vpop.xlane.xlu0 %1118
        %v1120 = vadd.f32 %v848, %v1026
        %1121 = vadd.xlane.f32.xlu0 %v1120
        %v1122 = vpop.xlane.xlu0 %1121
        %v1123 = vadd.f32 %v850, %v1028
        %1124 = vadd.xlane.f32.xlu0 %v1123
        %v1125 = vpop.xlane.xlu0 %1124
        %v1126 = vrcp.pop 256.0
        %v1127 = vmul.f32 256.0, %v1126
        %v1128 = vsub.f32 1.0, %v1127
        %v1129 = vmul.f32 %v1126, %v1128
        %v1130 = vadd.f32 %v1126, %v1129
        %vm1131 = vweird.f32 %v1126
        %v1132 = vsel %vm1131, %v1126, %v1130
        %v1133 = vmul.f32 %v1032, %v1132
        %v1134 = vmul.f32 %v1035, %v1132
        %v1135 = vmul.f32 %v1038, %v1132
        %v1136 = vmul.f32 %v1041, %v1132
        %v1137 = vmul.f32 %v1044, %v1132
        %v1138 = vmul.f32 %v1047, %v1132
        %v1139 = vmul.f32 %v1050, %v1132
        %v1140 = vmul.f32 %v1053, %v1132
        %v1141 = vmul.f32 %v1056, %v1132
        %v1142 = vmul.f32 %v1059, %v1132
        %v1143 = vmul.f32 %v1062, %v1132
        %v1144 = vmul.f32 %v1065, %v1132
        %v1145 = vmul.f32 %v1068, %v1132
        %v1146 = vmul.f32 %v1071, %v1132
        %v1147 = vmul.f32 %v1074, %v1132
        %v1148 = vmul.f32 %v1077, %v1132
        %v1149 = vmul.f32 %v1080, %v1132
        %v1150 = vmul.f32 %v1083, %v1132
        %v1151 = vmul.f32 %v1086, %v1132
        %v1152 = vmul.f32 %v1089, %v1132
        %v1153 = vmul.f32 %v1092, %v1132
        %v1154 = vmul.f32 %v1095, %v1132
        %v1155 = vmul.f32 %v1098, %v1132
        %v1156 = vmul.f32 %v1101, %v1132
        %v1157 = vmul.f32 %v1104, %v1132
        %v1158 = vmul.f32 %v1107, %v1132
        %v1159 = vmul.f32 %v1110, %v1132
        %v1160 = vmul.f32 %v1113, %v1132
        %v1161 = vmul.f32 %v1116, %v1132
        %v1162 = vmul.f32 %v1119, %v1132
        %v1163 = vmul.f32 %v1122, %v1132
        %v1164 = vmul.f32 %v1125, %v1132
        %v1165 = vmul.f32 %v773, %v773
        %v1166 = vmul.f32 %v951, %v951
        %v1167 = vmul.f32 %v775, %v775
        %v1168 = vmul.f32 %v953, %v953
        %v1169 = vmul.f32 %v778, %v778
        %v1170 = vmul.f32 %v956, %v956
        %v1171 = vmul.f32 %v780, %v780
        %v1172 = vmul.f32 %v958, %v958
        %v1173 = vmul.f32 %v783, %v783
        %v1174 = vmul.f32 %v961, %v961
        %v1175 = vmul.f32 %v785, %v785
        %v1176 = vmul.f32 %v963, %v963
        %v1177 = vmul.f32 %v788, %v788
        %v1178 = vmul.f32 %v966, %v966
        %v1179 = vmul.f32 %v790, %v790
        %v1180 = vmul.f32 %v968, %v968
        %v1181 = vmul.f32 %v793, %v793
        %v1182 = vmul.f32 %v971, %v971
        %v1183 = vmul.f32 %v795, %v795
        %v1184 = vmul.f32 %v973, %v973
        %v1185 = vmul.f32 %v798, %v798
        %v1186 = vmul.f32 %v976, %v976
        %v1187 = vmul.f32 %v800, %v800
        %v1188 = vmul.f32 %v978, %v978
        %v1189 = vmul.f32 %v803, %v803
        %v1190 = vmul.f32 %v981, %v981
        %v1191 = vmul.f32 %v805, %v805
        %v1192 = vmul.f32 %v983, %v983
        %v1193 = vmul.f32 %v808, %v808
        %v1194 = vmul.f32 %v986, %v986
        %v1195 = vmul.f32 %v810, %v810
        %v1196 = vmul.f32 %v988, %v988
        %v1197 = vmul.f32 %v813, %v813
        %v1198 = vmul.f32 %v991, %v991
        %v1199 = vmul.f32 %v815, %v815
        %v1200 = vmul.f32 %v993, %v993
        %v1201 = vmul.f32 %v818, %v818
        %v1202 = vmul.f32 %v996, %v996
        %v1203 = vmul.f32 %v820, %v820
        %v1204 = vmul.f32 %v998, %v998
        %v1205 = vmul.f32 %v823, %v823
        %v1206 = vmul.f32 %v1001, %v1001
        %v1207 = vmul.f32 %v825, %v825
        %v1208 = vmul.f32 %v1003, %v1003
        %v1209 = vmul.f32 %v828, %v828
        %v1210 = vmul.f32 %v1006, %v1006
        %v1211 = vmul.f32 %v830, %v830
        %v1212 = vmul.f32 %v1008, %v1008
        %v1213 = vmul.f32 %v833, %v833
        %v1214 = vmul.f32 %v1011, %v1011
        %v1215 = vmul.f32 %v835, %v835
        %v1216 = vmul.f32 %v1013, %v1013
        %v1217 = vmul.f32 %v838, %v838
        %v1218 = vmul.f32 %v1016, %v1016
        %v1219 = vmul.f32 %v840, %v840
        %v1220 = vmul.f32 %v1018, %v1018
        %v1221 = vmul.f32 %v843, %v843
        %v1222 = vmul.f32 %v1021, %v1021
        %v1223 = vmul.f32 %v845, %v845
        %v1224 = vmul.f32 %v1023, %v1023
        %v1225 = vmul.f32 %v848, %v848
        %v1226 = vmul.f32 %v1026, %v1026
        %v1227 = vmul.f32 %v850, %v850
        %v1228 = vmul.f32 %v1028, %v1028
        %v1229 = vadd.f32 %v1165, %v1166
        %1230 = vadd.xlane.f32.xlu0 %v1229
        %v1231 = vpop.xlane.xlu0 %1230
        %v1232 = vadd.f32 %v1167, %v1168
        %1233 = vadd.xlane.f32.xlu0 %v1232
        %v1234 = vpop.xlane.xlu0 %1233
        %v1235 = vadd.f32 %v1169, %v1170
        %1236 = vadd.xlane.f32.xlu0 %v1235
        %v1237 = vpop.xlane.xlu0 %1236
        %v1238 = vadd.f32 %v1171, %v1172
        %1239 = vadd.xlane.f32.xlu0 %v1238
        %v1240 = vpop.xlane.xlu0 %1239
        %v1241 = vadd.f32 %v1173, %v1174
        %1242 = vadd.xlane.f32.xlu0 %v1241
        %v1243 = vpop.xlane.xlu0 %1242
        %v1244 = vadd.f32 %v1175, %v1176
        %1245 = vadd.xlane.f32.xlu0 %v1244
        %v1246 = vpop.xlane.xlu0 %1245
        %v1247 = vadd.f32 %v1177, %v1178
        %1248 = vadd.xlane.f32.xlu0 %v1247
        %v1249 = vpop.xlane.xlu0 %1248
        %v1250 = vadd.f32 %v1179, %v1180
        %1251 = vadd.xlane.f32.xlu0 %v1250
        %v1252 = vpop.xlane.xlu0 %1251
        %v1253 = vadd.f32 %v1181, %v1182
        %1254 = vadd.xlane.f32.xlu0 %v1253
        %v1255 = vpop.xlane.xlu0 %1254
        %v1256 = vadd.f32 %v1183, %v1184
        %1257 = vadd.xlane.f32.xlu0 %v1256
        %v1258 = vpop.xlane.xlu0 %1257
        %v1259 = vadd.f32 %v1185, %v1186
        %1260 = vadd.xlane.f32.xlu0 %v1259
        %v1261 = vpop.xlane.xlu0 %1260
        %v1262 = vadd.f32 %v1187, %v1188
        %1263 = vadd.xlane.f32.xlu0 %v1262
        %v1264 = vpop.xlane.xlu0 %1263
        %v1265 = vadd.f32 %v1189, %v1190
        %1266 = vadd.xlane.f32.xlu0 %v1265
        %v1267 = vpop.xlane.xlu0 %1266
        %v1268 = vadd.f32 %v1191, %v1192
        %1269 = vadd.xlane.f32.xlu0 %v1268
        %v1270 = vpop.xlane.xlu0 %1269
        %v1271 = vadd.f32 %v1193, %v1194
        %1272 = vadd.xlane.f32.xlu0 %v1271
        %v1273 = vpop.xlane.xlu0 %1272
        %v1274 = vadd.f32 %v1195, %v1196
        %1275 = vadd.xlane.f32.xlu0 %v1274
        %v1276 = vpop.xlane.xlu0 %1275
        %v1277 = vadd.f32 %v1197, %v1198
        %1278 = vadd.xlane.f32.xlu0 %v1277
        %v1279 = vpop.xlane.xlu0 %1278
        %v1280 = vadd.f32 %v1199, %v1200
        %1281 = vadd.xlane.f32.xlu0 %v1280
        %v1282 = vpop.xlane.xlu0 %1281
        %v1283 = vadd.f32 %v1201, %v1202
        %1284 = vadd.xlane.f32.xlu0 %v1283
        %v1285 = vpop.xlane.xlu0 %1284
        %v1286 = vadd.f32 %v1203, %v1204
        %1287 = vadd.xlane.f32.xlu0 %v1286
        %v1288 = vpop.xlane.xlu0 %1287
        %v1289 = vadd.f32 %v1205, %v1206
        %1290 = vadd.xlane.f32.xlu0 %v1289
        %v1291 = vpop.xlane.xlu0 %1290
        %v1292 = vadd.f32 %v1207, %v1208
        %1293 = vadd.xlane.f32.xlu0 %v1292
        %v1294 = vpop.xlane.xlu0 %1293
        %v1295 = vadd.f32 %v1209, %v1210
        %1296 = vadd.xlane.f32.xlu0 %v1295
        %v1297 = vpop.xlane.xlu0 %1296
        %v1298 = vadd.f32 %v1211, %v1212
        %1299 = vadd.xlane.f32.xlu0 %v1298
        %v1300 = vpop.xlane.xlu0 %1299
        %v1301 = vadd.f32 %v1213, %v1214
        %1302 = vadd.xlane.f32.xlu0 %v1301
        %v1303 = vpop.xlane.xlu0 %1302
        %v1304 = vadd.f32 %v1215, %v1216
        %1305 = vadd.xlane.f32.xlu0 %v1304
        %v1306 = vpop.xlane.xlu0 %1305
        %v1307 = vadd.f32 %v1217, %v1218
        %1308 = vadd.xlane.f32.xlu0 %v1307
        %v1309 = vpop.xlane.xlu0 %1308
        %v1310 = vadd.f32 %v1219, %v1220
        %1311 = vadd.xlane.f32.xlu0 %v1310
        %v1312 = vpop.xlane.xlu0 %1311
        %v1313 = vadd.f32 %v1221, %v1222
        %1314 = vadd.xlane.f32.xlu0 %v1313
        %v1315 = vpop.xlane.xlu0 %1314
        %v1316 = vadd.f32 %v1223, %v1224
        %1317 = vadd.xlane.f32.xlu0 %v1316
        %v1318 = vpop.xlane.xlu0 %1317
        %v1319 = vadd.f32 %v1225, %v1226
        %1320 = vadd.xlane.f32.xlu0 %v1319
        %v1321 = vpop.xlane.xlu0 %1320
        %v1322 = vadd.f32 %v1227, %v1228
        %1323 = vadd.xlane.f32.xlu0 %v1322
        %v1324 = vpop.xlane.xlu0 %1323
        %v1325 = vmul.f32 %v1231, %v1132
        %v1326 = vmul.f32 %v1234, %v1132
        %v1327 = vmul.f32 %v1237, %v1132
        %v1328 = vmul.f32 %v1240, %v1132
        %v1329 = vmul.f32 %v1243, %v1132
        %v1330 = vmul.f32 %v1246, %v1132
        %v1331 = vmul.f32 %v1249, %v1132
        %v1332 = vmul.f32 %v1252, %v1132
        %v1333 = vmul.f32 %v1255, %v1132
        %v1334 = vmul.f32 %v1258, %v1132
        %v1335 = vmul.f32 %v1261, %v1132
        %v1336 = vmul.f32 %v1264, %v1132
        %v1337 = vmul.f32 %v1267, %v1132
        %v1338 = vmul.f32 %v1270, %v1132
        %v1339 = vmul.f32 %v1273, %v1132
        %v1340 = vmul.f32 %v1276, %v1132
        %v1341 = vmul.f32 %v1279, %v1132
        %v1342 = vmul.f32 %v1282, %v1132
        %v1343 = vmul.f32 %v1285, %v1132
        %v1344 = vmul.f32 %v1288, %v1132
        %v1345 = vmul.f32 %v1291, %v1132
        %v1346 = vmul.f32 %v1294, %v1132
        %v1347 = vmul.f32 %v1297, %v1132
        %v1348 = vmul.f32 %v1300, %v1132
        %v1349 = vmul.f32 %v1303, %v1132
        %v1350 = vmul.f32 %v1306, %v1132
        %v1351 = vmul.f32 %v1309, %v1132
        %v1352 = vmul.f32 %v1312, %v1132
        %v1353 = vmul.f32 %v1315, %v1132
        %v1354 = vmul.f32 %v1318, %v1132
        %v1355 = vmul.f32 %v1321, %v1132
        %v1356 = vmul.f32 %v1324, %v1132
        %v1357 = vmul.f32 %v1133, %v1133
        %v1358 = vmul.f32 %v1134, %v1134
        %v1359 = vmul.f32 %v1135, %v1135
        %v1360 = vmul.f32 %v1136, %v1136
        %v1361 = vmul.f32 %v1137, %v1137
        %v1362 = vmul.f32 %v1138, %v1138
        %v1363 = vmul.f32 %v1139, %v1139
        %v1364 = vmul.f32 %v1140, %v1140
        %v1365 = vmul.f32 %v1141, %v1141
        %v1366 = vmul.f32 %v1142, %v1142
        %v1367 = vmul.f32 %v1143, %v1143
        %v1368 = vmul.f32 %v1144, %v1144
        %v1369 = vmul.f32 %v1145, %v1145
        %v1370 = vmul.f32 %v1146, %v1146
        %v1371 = vmul.f32 %v1147, %v1147
        %v1372 = vmul.f32 %v1148, %v1148
        %v1373 = vmul.f32 %v1149, %v1149
        %v1374 = vmul.f32 %v1150, %v1150
        %v1375 = vmul.f32 %v1151, %v1151
        %v1376 = vmul.f32 %v1152, %v1152
        %v1377 = vmul.f32 %v1153, %v1153
        %v1378 = vmul.f32 %v1154, %v1154
        %v1379 = vmul.f32 %v1155, %v1155
        %v1380 = vmul.f32 %v1156, %v1156
        %v1381 = vmul.f32 %v1157, %v1157
        %v1382 = vmul.f32 %v1158, %v1158
        %v1383 = vmul.f32 %v1159, %v1159
        %v1384 = vmul.f32 %v1160, %v1160
        %v1385 = vmul.f32 %v1161, %v1161
        %v1386 = vmul.f32 %v1162, %v1162
        %v1387 = vmul.f32 %v1163, %v1163
        %v1388 = vmul.f32 %v1164, %v1164
        %v1389 = vsub.f32 %v1325, %v1357
        %v1390 = vsub.f32 %v1326, %v1358
        %v1391 = vsub.f32 %v1327, %v1359
        %v1392 = vsub.f32 %v1328, %v1360
        %v1393 = vsub.f32 %v1329, %v1361
        %v1394 = vsub.f32 %v1330, %v1362
        %v1395 = vsub.f32 %v1331, %v1363
        %v1396 = vsub.f32 %v1332, %v1364
        %v1397 = vsub.f32 %v1333, %v1365
        %v1398 = vsub.f32 %v1334, %v1366
        %v1399 = vsub.f32 %v1335, %v1367
        %v1400 = vsub.f32 %v1336, %v1368
        %v1401 = vsub.f32 %v1337, %v1369
        %v1402 = vsub.f32 %v1338, %v1370
        %v1403 = vsub.f32 %v1339, %v1371
        %v1404 = vsub.f32 %v1340, %v1372
        %v1405 = vsub.f32 %v1341, %v1373
        %v1406 = vsub.f32 %v1342, %v1374
        %v1407 = vsub.f32 %v1343, %v1375
        %v1408 = vsub.f32 %v1344, %v1376
        %v1409 = vsub.f32 %v1345, %v1377
        %v1410 = vsub.f32 %v1346, %v1378
        %v1411 = vsub.f32 %v1347, %v1379
        %v1412 = vsub.f32 %v1348, %v1380
        %v1413 = vsub.f32 %v1349, %v1381
        %v1414 = vsub.f32 %v1350, %v1382
        %v1415 = vsub.f32 %v1351, %v1383
        %v1416 = vsub.f32 %v1352, %v1384
        %v1417 = vsub.f32 %v1353, %v1385
        %v1418 = vsub.f32 %v1354, %v1386
        %v1419 = vsub.f32 %v1355, %v1387
        %v1420 = vsub.f32 %v1356, %v1388
        %v1421 = vadd.f32 %v1389, 1e-05
        %v1422 = vadd.f32 %v1390, 1e-05
        %v1423 = vadd.f32 %v1391, 1e-05
        %v1424 = vadd.f32 %v1392, 1e-05
        %v1425 = vadd.f32 %v1393, 1e-05
        %v1426 = vadd.f32 %v1394, 1e-05
        %v1427 = vadd.f32 %v1395, 1e-05
        %v1428 = vadd.f32 %v1396, 1e-05
        %v1429 = vadd.f32 %v1397, 1e-05
        %v1430 = vadd.f32 %v1398, 1e-05
        %v1431 = vadd.f32 %v1399, 1e-05
        %v1432 = vadd.f32 %v1400, 1e-05
        %v1433 = vadd.f32 %v1401, 1e-05
        %v1434 = vadd.f32 %v1402, 1e-05
        %v1435 = vadd.f32 %v1403, 1e-05
        %v1436 = vadd.f32 %v1404, 1e-05
        %v1437 = vadd.f32 %v1405, 1e-05
        %v1438 = vadd.f32 %v1406, 1e-05
        %v1439 = vadd.f32 %v1407, 1e-05
        %v1440 = vadd.f32 %v1408, 1e-05
        %v1441 = vadd.f32 %v1409, 1e-05
        %v1442 = vadd.f32 %v1410, 1e-05
        %v1443 = vadd.f32 %v1411, 1e-05
        %v1444 = vadd.f32 %v1412, 1e-05
        %v1445 = vadd.f32 %v1413, 1e-05
        %v1446 = vadd.f32 %v1414, 1e-05
        %v1447 = vadd.f32 %v1415, 1e-05
        %v1448 = vadd.f32 %v1416, 1e-05
        %v1449 = vadd.f32 %v1417, 1e-05
        %v1450 = vadd.f32 %v1418, 1e-05
        %v1451 = vadd.f32 %v1419, 1e-05
        %v1452 = vadd.f32 %v1420, 1e-05
        %v1453 = vrsqrt.pop %v1421
        %v1454 = vmul.f32 %v1453, %v1421
        %v1455 = vmul.f32 %v1454, %v1453
        %v1456 = vmul.f32 0.5, %v1455
        %v1457 = vsub.f32 1.5, %v1456
        %v1458 = vmul.f32 %v1453, %v1457
        %vm1459 = vweird.f32 %v1421
        %vm1460 = vweird.f32 %v1453
        %vm1461 = vmor %vm1459, %vm1460
        %v1462 = vsel %vm1461, %v1453, %v1458
        %v1463 = vrsqrt.pop %v1422
        %v1464 = vmul.f32 %v1463, %v1422
        %v1465 = vmul.f32 %v1464, %v1463
        %v1466 = vmul.f32 0.5, %v1465
        %v1467 = vsub.f32 1.5, %v1466
        %v1468 = vmul.f32 %v1463, %v1467
        %vm1469 = vweird.f32 %v1422
        %vm1470 = vweird.f32 %v1463
        %vm1471 = vmor %vm1469, %vm1470
        %v1472 = vsel %vm1471, %v1463, %v1468
        %v1473 = vrsqrt.pop %v1423
        %v1474 = vmul.f32 %v1473, %v1423
        %v1475 = vmul.f32 %v1474, %v1473
        %v1476 = vmul.f32 0.5, %v1475
        %v1477 = vsub.f32 1.5, %v1476
        %v1478 = vmul.f32 %v1473, %v1477
        %vm1479 = vweird.f32 %v1423
        %vm1480 = vweird.f32 %v1473
        %vm1481 = vmor %vm1479, %vm1480
        %v1482 = vsel %vm1481, %v1473, %v1478
        %v1483 = vrsqrt.pop %v1424
        %v1484 = vmul.f32 %v1483, %v1424
        %v1485 = vmul.f32 %v1484, %v1483
        %v1486 = vmul.f32 0.5, %v1485
        %v1487 = vsub.f32 1.5, %v1486
        %v1488 = vmul.f32 %v1483, %v1487
        %vm1489 = vweird.f32 %v1424
        %vm1490 = vweird.f32 %v1483
        %vm1491 = vmor %vm1489, %vm1490
        %v1492 = vsel %vm1491, %v1483, %v1488
        %v1493 = vrsqrt.pop %v1425
        %v1494 = vmul.f32 %v1493, %v1425
        %v1495 = vmul.f32 %v1494, %v1493
        %v1496 = vmul.f32 0.5, %v1495
        %v1497 = vsub.f32 1.5, %v1496
        %v1498 = vmul.f32 %v1493, %v1497
        %vm1499 = vweird.f32 %v1425
        %vm1500 = vweird.f32 %v1493
        %vm1501 = vmor %vm1499, %vm1500
        %v1502 = vsel %vm1501, %v1493, %v1498
        %v1503 = vrsqrt.pop %v1426
        %v1504 = vmul.f32 %v1503, %v1426
        %v1505 = vmul.f32 %v1504, %v1503
        %v1506 = vmul.f32 0.5, %v1505
        %v1507 = vsub.f32 1.5, %v1506
        %v1508 = vmul.f32 %v1503, %v1507
        %vm1509 = vweird.f32 %v1426
        %vm1510 = vweird.f32 %v1503
        %vm1511 = vmor %vm1509, %vm1510
        %v1512 = vsel %vm1511, %v1503, %v1508
        %v1513 = vrsqrt.pop %v1427
        %v1514 = vmul.f32 %v1513, %v1427
        %v1515 = vmul.f32 %v1514, %v1513
        %v1516 = vmul.f32 0.5, %v1515
        %v1517 = vsub.f32 1.5, %v1516
        %v1518 = vmul.f32 %v1513, %v1517
        %vm1519 = vweird.f32 %v1427
        %vm1520 = vweird.f32 %v1513
        %vm1521 = vmor %vm1519, %vm1520
        %v1522 = vsel %vm1521, %v1513, %v1518
        %v1523 = vrsqrt.pop %v1428
        %v1524 = vmul.f32 %v1523, %v1428
        %v1525 = vmul.f32 %v1524, %v1523
        %v1526 = vmul.f32 0.5, %v1525
        %v1527 = vsub.f32 1.5, %v1526
        %v1528 = vmul.f32 %v1523, %v1527
        %vm1529 = vweird.f32 %v1428
        %vm1530 = vweird.f32 %v1523
        %vm1531 = vmor %vm1529, %vm1530
        %v1532 = vsel %vm1531, %v1523, %v1528
        %v1533 = vrsqrt.pop %v1429
        %v1534 = vmul.f32 %v1533, %v1429
        %v1535 = vmul.f32 %v1534, %v1533
        %v1536 = vmul.f32 0.5, %v1535
        %v1537 = vsub.f32 1.5, %v1536
        %v1538 = vmul.f32 %v1533, %v1537
        %vm1539 = vweird.f32 %v1429
        %vm1540 = vweird.f32 %v1533
        %vm1541 = vmor %vm1539, %vm1540
        %v1542 = vsel %vm1541, %v1533, %v1538
        %v1543 = vrsqrt.pop %v1430
        %v1544 = vmul.f32 %v1543, %v1430
        %v1545 = vmul.f32 %v1544, %v1543
        %v1546 = vmul.f32 0.5, %v1545
        %v1547 = vsub.f32 1.5, %v1546
        %v1548 = vmul.f32 %v1543, %v1547
        %vm1549 = vweird.f32 %v1430
        %vm1550 = vweird.f32 %v1543
        %vm1551 = vmor %vm1549, %vm1550
        %v1552 = vsel %vm1551, %v1543, %v1548
        %v1553 = vrsqrt.pop %v1431
        %v1554 = vmul.f32 %v1553, %v1431
        %v1555 = vmul.f32 %v1554, %v1553
        %v1556 = vmul.f32 0.5, %v1555
        %v1557 = vsub.f32 1.5, %v1556
        %v1558 = vmul.f32 %v1553, %v1557
        %vm1559 = vweird.f32 %v1431
        %vm1560 = vweird.f32 %v1553
        %vm1561 = vmor %vm1559, %vm1560
        %v1562 = vsel %vm1561, %v1553, %v1558
        %v1563 = vrsqrt.pop %v1432
        %v1564 = vmul.f32 %v1563, %v1432
        %v1565 = vmul.f32 %v1564, %v1563
        %v1566 = vmul.f32 0.5, %v1565
        %v1567 = vsub.f32 1.5, %v1566
        %v1568 = vmul.f32 %v1563, %v1567
        %vm1569 = vweird.f32 %v1432
        %vm1570 = vweird.f32 %v1563
        %vm1571 = vmor %vm1569, %vm1570
        %v1572 = vsel %vm1571, %v1563, %v1568
        %v1573 = vrsqrt.pop %v1433
        %v1574 = vmul.f32 %v1573, %v1433
        %v1575 = vmul.f32 %v1574, %v1573
        %v1576 = vmul.f32 0.5, %v1575
        %v1577 = vsub.f32 1.5, %v1576
        %v1578 = vmul.f32 %v1573, %v1577
        %vm1579 = vweird.f32 %v1433
        %vm1580 = vweird.f32 %v1573
        %vm1581 = vmor %vm1579, %vm1580
        %v1582 = vsel %vm1581, %v1573, %v1578
        %v1583 = vrsqrt.pop %v1434
        %v1584 = vmul.f32 %v1583, %v1434
        %v1585 = vmul.f32 %v1584, %v1583
        %v1586 = vmul.f32 0.5, %v1585
        %v1587 = vsub.f32 1.5, %v1586
        %v1588 = vmul.f32 %v1583, %v1587
        %vm1589 = vweird.f32 %v1434
        %vm1590 = vweird.f32 %v1583
        %vm1591 = vmor %vm1589, %vm1590
        %v1592 = vsel %vm1591, %v1583, %v1588
        %v1593 = vrsqrt.pop %v1435
        %v1594 = vmul.f32 %v1593, %v1435
        %v1595 = vmul.f32 %v1594, %v1593
        %v1596 = vmul.f32 0.5, %v1595
        %v1597 = vsub.f32 1.5, %v1596
        %v1598 = vmul.f32 %v1593, %v1597
        %vm1599 = vweird.f32 %v1435
        %vm1600 = vweird.f32 %v1593
        %vm1601 = vmor %vm1599, %vm1600
        %v1602 = vsel %vm1601, %v1593, %v1598
        %v1603 = vrsqrt.pop %v1436
        %v1604 = vmul.f32 %v1603, %v1436
        %v1605 = vmul.f32 %v1604, %v1603
        %v1606 = vmul.f32 0.5, %v1605
        %v1607 = vsub.f32 1.5, %v1606
        %v1608 = vmul.f32 %v1603, %v1607
        %vm1609 = vweird.f32 %v1436
        %vm1610 = vweird.f32 %v1603
        %vm1611 = vmor %vm1609, %vm1610
        %v1612 = vsel %vm1611, %v1603, %v1608
        %v1613 = vrsqrt.pop %v1437
        %v1614 = vmul.f32 %v1613, %v1437
        %v1615 = vmul.f32 %v1614, %v1613
        %v1616 = vmul.f32 0.5, %v1615
        %v1617 = vsub.f32 1.5, %v1616
        %v1618 = vmul.f32 %v1613, %v1617
        %vm1619 = vweird.f32 %v1437
        %vm1620 = vweird.f32 %v1613
        %vm1621 = vmor %vm1619, %vm1620
        %v1622 = vsel %vm1621, %v1613, %v1618
        %v1623 = vrsqrt.pop %v1438
        %v1624 = vmul.f32 %v1623, %v1438
        %v1625 = vmul.f32 %v1624, %v1623
        %v1626 = vmul.f32 0.5, %v1625
        %v1627 = vsub.f32 1.5, %v1626
        %v1628 = vmul.f32 %v1623, %v1627
        %vm1629 = vweird.f32 %v1438
        %vm1630 = vweird.f32 %v1623
        %vm1631 = vmor %vm1629, %vm1630
        %v1632 = vsel %vm1631, %v1623, %v1628
        %v1633 = vrsqrt.pop %v1439
        %v1634 = vmul.f32 %v1633, %v1439
        %v1635 = vmul.f32 %v1634, %v1633
        %v1636 = vmul.f32 0.5, %v1635
        %v1637 = vsub.f32 1.5, %v1636
        %v1638 = vmul.f32 %v1633, %v1637
        %vm1639 = vweird.f32 %v1439
        %vm1640 = vweird.f32 %v1633
        %vm1641 = vmor %vm1639, %vm1640
        %v1642 = vsel %vm1641, %v1633, %v1638
        %v1643 = vrsqrt.pop %v1440
        %v1644 = vmul.f32 %v1643, %v1440
        %v1645 = vmul.f32 %v1644, %v1643
        %v1646 = vmul.f32 0.5, %v1645
        %v1647 = vsub.f32 1.5, %v1646
        %v1648 = vmul.f32 %v1643, %v1647
        %vm1649 = vweird.f32 %v1440
        %vm1650 = vweird.f32 %v1643
        %vm1651 = vmor %vm1649, %vm1650
        %v1652 = vsel %vm1651, %v1643, %v1648
        %v1653 = vrsqrt.pop %v1441
        %v1654 = vmul.f32 %v1653, %v1441
        %v1655 = vmul.f32 %v1654, %v1653
        %v1656 = vmul.f32 0.5, %v1655
        %v1657 = vsub.f32 1.5, %v1656
        %v1658 = vmul.f32 %v1653, %v1657
        %vm1659 = vweird.f32 %v1441
        %vm1660 = vweird.f32 %v1653
        %vm1661 = vmor %vm1659, %vm1660
        %v1662 = vsel %vm1661, %v1653, %v1658
        %v1663 = vrsqrt.pop %v1442
        %v1664 = vmul.f32 %v1663, %v1442
        %v1665 = vmul.f32 %v1664, %v1663
        %v1666 = vmul.f32 0.5, %v1665
        %v1667 = vsub.f32 1.5, %v1666
        %v1668 = vmul.f32 %v1663, %v1667
        %vm1669 = vweird.f32 %v1442
        %vm1670 = vweird.f32 %v1663
        %vm1671 = vmor %vm1669, %vm1670
        %v1672 = vsel %vm1671, %v1663, %v1668
        %v1673 = vrsqrt.pop %v1443
        %v1674 = vmul.f32 %v1673, %v1443
        %v1675 = vmul.f32 %v1674, %v1673
        %v1676 = vmul.f32 0.5, %v1675
        %v1677 = vsub.f32 1.5, %v1676
        %v1678 = vmul.f32 %v1673, %v1677
        %vm1679 = vweird.f32 %v1443
        %vm1680 = vweird.f32 %v1673
        %vm1681 = vmor %vm1679, %vm1680
        %v1682 = vsel %vm1681, %v1673, %v1678
        %v1683 = vrsqrt.pop %v1444
        %v1684 = vmul.f32 %v1683, %v1444
        %v1685 = vmul.f32 %v1684, %v1683
        %v1686 = vmul.f32 0.5, %v1685
        %v1687 = vsub.f32 1.5, %v1686
        %v1688 = vmul.f32 %v1683, %v1687
        %vm1689 = vweird.f32 %v1444
        %vm1690 = vweird.f32 %v1683
        %vm1691 = vmor %vm1689, %vm1690
        %v1692 = vsel %vm1691, %v1683, %v1688
        %v1693 = vrsqrt.pop %v1445
        %v1694 = vmul.f32 %v1693, %v1445
        %v1695 = vmul.f32 %v1694, %v1693
        %v1696 = vmul.f32 0.5, %v1695
        %v1697 = vsub.f32 1.5, %v1696
        %v1698 = vmul.f32 %v1693, %v1697
        %vm1699 = vweird.f32 %v1445
        %vm1700 = vweird.f32 %v1693
        %vm1701 = vmor %vm1699, %vm1700
        %v1702 = vsel %vm1701, %v1693, %v1698
        %v1703 = vrsqrt.pop %v1446
        %v1704 = vmul.f32 %v1703, %v1446
        %v1705 = vmul.f32 %v1704, %v1703
        %v1706 = vmul.f32 0.5, %v1705
        %v1707 = vsub.f32 1.5, %v1706
        %v1708 = vmul.f32 %v1703, %v1707
        %vm1709 = vweird.f32 %v1446
        %vm1710 = vweird.f32 %v1703
        %vm1711 = vmor %vm1709, %vm1710
        %v1712 = vsel %vm1711, %v1703, %v1708
        %v1713 = vrsqrt.pop %v1447
        %v1714 = vmul.f32 %v1713, %v1447
        %v1715 = vmul.f32 %v1714, %v1713
        %v1716 = vmul.f32 0.5, %v1715
        %v1717 = vsub.f32 1.5, %v1716
        %v1718 = vmul.f32 %v1713, %v1717
        %vm1719 = vweird.f32 %v1447
        %vm1720 = vweird.f32 %v1713
        %vm1721 = vmor %vm1719, %vm1720
        %v1722 = vsel %vm1721, %v1713, %v1718
        %v1723 = vrsqrt.pop %v1448
        %v1724 = vmul.f32 %v1723, %v1448
        %v1725 = vmul.f32 %v1724, %v1723
        %v1726 = vmul.f32 0.5, %v1725
        %v1727 = vsub.f32 1.5, %v1726
        %v1728 = vmul.f32 %v1723, %v1727
        %vm1729 = vweird.f32 %v1448
        %vm1730 = vweird.f32 %v1723
        %vm1731 = vmor %vm1729, %vm1730
        %v1732 = vsel %vm1731, %v1723, %v1728
        %v1733 = vrsqrt.pop %v1449
        %v1734 = vmul.f32 %v1733, %v1449
        %v1735 = vmul.f32 %v1734, %v1733
        %v1736 = vmul.f32 0.5, %v1735
        %v1737 = vsub.f32 1.5, %v1736
        %v1738 = vmul.f32 %v1733, %v1737
        %vm1739 = vweird.f32 %v1449
        %vm1740 = vweird.f32 %v1733
        %vm1741 = vmor %vm1739, %vm1740
        %v1742 = vsel %vm1741, %v1733, %v1738
        %v1743 = vrsqrt.pop %v1450
        %v1744 = vmul.f32 %v1743, %v1450
        %v1745 = vmul.f32 %v1744, %v1743
        %v1746 = vmul.f32 0.5, %v1745
        %v1747 = vsub.f32 1.5, %v1746
        %v1748 = vmul.f32 %v1743, %v1747
        %vm1749 = vweird.f32 %v1450
        %vm1750 = vweird.f32 %v1743
        %vm1751 = vmor %vm1749, %vm1750
        %v1752 = vsel %vm1751, %v1743, %v1748
        %v1753 = vrsqrt.pop %v1451
        %v1754 = vmul.f32 %v1753, %v1451
        %v1755 = vmul.f32 %v1754, %v1753
        %v1756 = vmul.f32 0.5, %v1755
        %v1757 = vsub.f32 1.5, %v1756
        %v1758 = vmul.f32 %v1753, %v1757
        %vm1759 = vweird.f32 %v1451
        %vm1760 = vweird.f32 %v1753
        %vm1761 = vmor %vm1759, %vm1760
        %v1762 = vsel %vm1761, %v1753, %v1758
        %v1763 = vrsqrt.pop %v1452
        %v1764 = vmul.f32 %v1763, %v1452
        %v1765 = vmul.f32 %v1764, %v1763
        %v1766 = vmul.f32 0.5, %v1765
        %v1767 = vsub.f32 1.5, %v1766
        %v1768 = vmul.f32 %v1763, %v1767
        %vm1769 = vweird.f32 %v1452
        %vm1770 = vweird.f32 %v1763
        %vm1771 = vmor %vm1769, %vm1770
        %v1772 = vsel %vm1771, %v1763, %v1768
        %v1773 = vsub.f32 %v773, %v1133
        %v1774 = vsub.f32 %v951, %v1133
        %v1775 = vsub.f32 %v775, %v1134
        %v1776 = vsub.f32 %v953, %v1134
        %v1777 = vsub.f32 %v778, %v1135
        %v1778 = vsub.f32 %v956, %v1135
        %v1779 = vsub.f32 %v780, %v1136
        %v1780 = vsub.f32 %v958, %v1136
        %v1781 = vsub.f32 %v783, %v1137
        %v1782 = vsub.f32 %v961, %v1137
        %v1783 = vsub.f32 %v785, %v1138
        %v1784 = vsub.f32 %v963, %v1138
        %v1785 = vsub.f32 %v788, %v1139
        %v1786 = vsub.f32 %v966, %v1139
        %v1787 = vsub.f32 %v790, %v1140
        %v1788 = vsub.f32 %v968, %v1140
        %v1789 = vsub.f32 %v793, %v1141
        %v1790 = vsub.f32 %v971, %v1141
        %v1791 = vsub.f32 %v795, %v1142
        %v1792 = vsub.f32 %v973, %v1142
        %v1793 = vsub.f32 %v798, %v1143
        %v1794 = vsub.f32 %v976, %v1143
        %v1795 = vsub.f32 %v800, %v1144
        %v1796 = vsub.f32 %v978, %v1144
        %v1797 = vsub.f32 %v803, %v1145
        %v1798 = vsub.f32 %v981, %v1145
        %v1799 = vsub.f32 %v805, %v1146
        %v1800 = vsub.f32 %v983, %v1146
        %v1801 = vsub.f32 %v808, %v1147
        %v1802 = vsub.f32 %v986, %v1147
        %v1803 = vsub.f32 %v810, %v1148
        %v1804 = vsub.f32 %v988, %v1148
        %v1805 = vsub.f32 %v813, %v1149
        %v1806 = vsub.f32 %v991, %v1149
        %v1807 = vsub.f32 %v815, %v1150
        %v1808 = vsub.f32 %v993, %v1150
        %v1809 = vsub.f32 %v818, %v1151
        %v1810 = vsub.f32 %v996, %v1151
        %v1811 = vsub.f32 %v820, %v1152
        %v1812 = vsub.f32 %v998, %v1152
        %v1813 = vsub.f32 %v823, %v1153
        %v1814 = vsub.f32 %v1001, %v1153
        %v1815 = vsub.f32 %v825, %v1154
        %v1816 = vsub.f32 %v1003, %v1154
        %v1817 = vsub.f32 %v828, %v1155
        %v1818 = vsub.f32 %v1006, %v1155
        %v1819 = vsub.f32 %v830, %v1156
        %v1820 = vsub.f32 %v1008, %v1156
        %v1821 = vsub.f32 %v833, %v1157
        %v1822 = vsub.f32 %v1011, %v1157
        %v1823 = vsub.f32 %v835, %v1158
        %v1824 = vsub.f32 %v1013, %v1158
        %v1825 = vsub.f32 %v838, %v1159
        %v1826 = vsub.f32 %v1016, %v1159
        %v1827 = vsub.f32 %v840, %v1160
        %v1828 = vsub.f32 %v1018, %v1160
        %v1829 = vsub.f32 %v843, %v1161
        %v1830 = vsub.f32 %v1021, %v1161
        %v1831 = vsub.f32 %v845, %v1162
        %v1832 = vsub.f32 %v1023, %v1162
        %v1833 = vsub.f32 %v848, %v1163
        %v1834 = vsub.f32 %v1026, %v1163
        %v1835 = vsub.f32 %v850, %v1164
        %v1836 = vsub.f32 %v1028, %v1164
        %v1837 = vmul.f32 %v1773, %v1462
        %v1838 = vmul.f32 %v1774, %v1462
        %v1839 = vmul.f32 %v1775, %v1472
        %v1840 = vmul.f32 %v1776, %v1472
        %v1841 = vmul.f32 %v1777, %v1482
        %v1842 = vmul.f32 %v1778, %v1482
        %v1843 = vmul.f32 %v1779, %v1492
        %v1844 = vmul.f32 %v1780, %v1492
        %v1845 = vmul.f32 %v1781, %v1502
        %v1846 = vmul.f32 %v1782, %v1502
        %v1847 = vmul.f32 %v1783, %v1512
        %v1848 = vmul.f32 %v1784, %v1512
        %v1849 = vmul.f32 %v1785, %v1522
        %v1850 = vmul.f32 %v1786, %v1522
        %v1851 = vmul.f32 %v1787, %v1532
        %v1852 = vmul.f32 %v1788, %v1532
        %v1853 = vmul.f32 %v1789, %v1542
        %v1854 = vmul.f32 %v1790, %v1542
        %v1855 = vmul.f32 %v1791, %v1552
        %v1856 = vmul.f32 %v1792, %v1552
        %v1857 = vmul.f32 %v1793, %v1562
        %v1858 = vmul.f32 %v1794, %v1562
        %v1859 = vmul.f32 %v1795, %v1572
        %v1860 = vmul.f32 %v1796, %v1572
        %v1861 = vmul.f32 %v1797, %v1582
        %v1862 = vmul.f32 %v1798, %v1582
        %v1863 = vmul.f32 %v1799, %v1592
        %v1864 = vmul.f32 %v1800, %v1592
        %v1865 = vmul.f32 %v1801, %v1602
        %v1866 = vmul.f32 %v1802, %v1602
        %v1867 = vmul.f32 %v1803, %v1612
        %v1868 = vmul.f32 %v1804, %v1612
        %v1869 = vmul.f32 %v1805, %v1622
        %v1870 = vmul.f32 %v1806, %v1622
        %v1871 = vmul.f32 %v1807, %v1632
        %v1872 = vmul.f32 %v1808, %v1632
        %v1873 = vmul.f32 %v1809, %v1642
        %v1874 = vmul.f32 %v1810, %v1642
        %v1875 = vmul.f32 %v1811, %v1652
        %v1876 = vmul.f32 %v1812, %v1652
        %v1877 = vmul.f32 %v1813, %v1662
        %v1878 = vmul.f32 %v1814, %v1662
        %v1879 = vmul.f32 %v1815, %v1672
        %v1880 = vmul.f32 %v1816, %v1672
        %v1881 = vmul.f32 %v1817, %v1682
        %v1882 = vmul.f32 %v1818, %v1682
        %v1883 = vmul.f32 %v1819, %v1692
        %v1884 = vmul.f32 %v1820, %v1692
        %v1885 = vmul.f32 %v1821, %v1702
        %v1886 = vmul.f32 %v1822, %v1702
        %v1887 = vmul.f32 %v1823, %v1712
        %v1888 = vmul.f32 %v1824, %v1712
        %v1889 = vmul.f32 %v1825, %v1722
        %v1890 = vmul.f32 %v1826, %v1722
        %v1891 = vmul.f32 %v1827, %v1732
        %v1892 = vmul.f32 %v1828, %v1732
        %v1893 = vmul.f32 %v1829, %v1742
        %v1894 = vmul.f32 %v1830, %v1742
        %v1895 = vmul.f32 %v1831, %v1752
        %v1896 = vmul.f32 %v1832, %v1752
        %v1897 = vmul.f32 %v1833, %v1762
        %v1898 = vmul.f32 %v1834, %v1762
        %v1899 = vmul.f32 %v1835, %v1772
        %v1900 = vmul.f32 %v1836, %v1772
        %v1901 = vld [vmem:[%s3] sm:$0x3]
        %v1903 = vperm.slane %v1901, 0
        %v1904 = vperm.slane %v1901, 1
        %v1907 = vmul.f32 %v1837, %v1903
        %v1908 = vmul.f32 %v1838, %v1904
        %v1909 = vmul.f32 %v1839, %v1903
        %v1910 = vmul.f32 %v1840, %v1904
        %v1911 = vmul.f32 %v1841, %v1903
        %v1912 = vmul.f32 %v1842, %v1904
        %v1913 = vmul.f32 %v1843, %v1903
        %v1914 = vmul.f32 %v1844, %v1904
        %v1915 = vmul.f32 %v1845, %v1903
        %v1916 = vmul.f32 %v1846, %v1904
        %v1917 = vmul.f32 %v1847, %v1903
        %v1918 = vmul.f32 %v1848, %v1904
        %v1919 = vmul.f32 %v1849, %v1903
        %v1920 = vmul.f32 %v1850, %v1904
        %v1921 = vmul.f32 %v1851, %v1903
        %v1922 = vmul.f32 %v1852, %v1904
        %v1923 = vmul.f32 %v1853, %v1903
        %v1924 = vmul.f32 %v1854, %v1904
        %v1925 = vmul.f32 %v1855, %v1903
        %v1926 = vmul.f32 %v1856, %v1904
        %v1927 = vmul.f32 %v1857, %v1903
        %v1928 = vmul.f32 %v1858, %v1904
        %v1929 = vmul.f32 %v1859, %v1903
        %v1930 = vmul.f32 %v1860, %v1904
        %v1931 = vmul.f32 %v1861, %v1903
        %v1932 = vmul.f32 %v1862, %v1904
        %v1933 = vmul.f32 %v1863, %v1903
        %v1934 = vmul.f32 %v1864, %v1904
        %v1935 = vmul.f32 %v1865, %v1903
        %v1936 = vmul.f32 %v1866, %v1904
        %v1937 = vmul.f32 %v1867, %v1903
        %v1938 = vmul.f32 %v1868, %v1904
        %v1939 = vmul.f32 %v1869, %v1903
        %v1940 = vmul.f32 %v1870, %v1904
        %v1941 = vmul.f32 %v1871, %v1903
        %v1942 = vmul.f32 %v1872, %v1904
        %v1943 = vmul.f32 %v1873, %v1903
        %v1944 = vmul.f32 %v1874, %v1904
        %v1945 = vmul.f32 %v1875, %v1903
        %v1946 = vmul.f32 %v1876, %v1904
        %v1947 = vmul.f32 %v1877, %v1903
        %v1948 = vmul.f32 %v1878, %v1904
        %v1949 = vmul.f32 %v1879, %v1903
        %v1950 = vmul.f32 %v1880, %v1904
        %v1951 = vmul.f32 %v1881, %v1903
        %v1952 = vmul.f32 %v1882, %v1904
        %v1953 = vmul.f32 %v1883, %v1903
        %v1954 = vmul.f32 %v1884, %v1904
        %v1955 = vmul.f32 %v1885, %v1903
        %v1956 = vmul.f32 %v1886, %v1904
        %v1957 = vmul.f32 %v1887, %v1903
        %v1958 = vmul.f32 %v1888, %v1904
        %v1959 = vmul.f32 %v1889, %v1903
        %v1960 = vmul.f32 %v1890, %v1904
        %v1961 = vmul.f32 %v1891, %v1903
        %v1962 = vmul.f32 %v1892, %v1904
        %v1963 = vmul.f32 %v1893, %v1903
        %v1964 = vmul.f32 %v1894, %v1904
        %v1965 = vmul.f32 %v1895, %v1903
        %v1966 = vmul.f32 %v1896, %v1904
        %v1967 = vmul.f32 %v1897, %v1903
        %v1968 = vmul.f32 %v1898, %v1904
        %v1969 = vmul.f32 %v1899, %v1903
        %v1970 = vmul.f32 %v1900, %v1904
        %v1971 = vld [vmem:[#allocation9] sm:$0x3]
        %v1973 = vperm.slane %v1971, 0
        %v1974 = vperm.slane %v1971, 1
        %v1977 = vadd.f32 %v1907, %v1973
        %v1978 = vadd.f32 %v1908, %v1974
        %v1979 = vadd.f32 %v1909, %v1973
        %v1980 = vadd.f32 %v1910, %v1974
        %v1981 = vadd.f32 %v1911, %v1973
        %v1982 = vadd.f32 %v1912, %v1974
        %v1983 = vadd.f32 %v1913, %v1973
        %v1984 = vadd.f32 %v1914, %v1974
        %v1985 = vadd.f32 %v1915, %v1973
        %v1986 = vadd.f32 %v1916, %v1974
        %v1987 = vadd.f32 %v1917, %v1973
        %v1988 = vadd.f32 %v1918, %v1974
        %v1989 = vadd.f32 %v1919, %v1973
        %v1990 = vadd.f32 %v1920, %v1974
        %v1991 = vadd.f32 %v1921, %v1973
        %v1992 = vadd.f32 %v1922, %v1974
        %v1993 = vadd.f32 %v1923, %v1973
        %v1994 = vadd.f32 %v1924, %v1974
        %v1995 = vadd.f32 %v1925, %v1973
        %v1996 = vadd.f32 %v1926, %v1974
        %v1997 = vadd.f32 %v1927, %v1973
        %v1998 = vadd.f32 %v1928, %v1974
        %v1999 = vadd.f32 %v1929, %v1973
        %v2000 = vadd.f32 %v1930, %v1974
        %v2001 = vadd.f32 %v1931, %v1973
        %v2002 = vadd.f32 %v1932, %v1974
        %v2003 = vadd.f32 %v1933, %v1973
        %v2004 = vadd.f32 %v1934, %v1974
        %v2005 = vadd.f32 %v1935, %v1973
        %v2006 = vadd.f32 %v1936, %v1974
        %v2007 = vadd.f32 %v1937, %v1973
        %v2008 = vadd.f32 %v1938, %v1974
        %v2009 = vadd.f32 %v1939, %v1973
        %v2010 = vadd.f32 %v1940, %v1974
        %v2011 = vadd.f32 %v1941, %v1973
        %v2012 = vadd.f32 %v1942, %v1974
        %v2013 = vadd.f32 %v1943, %v1973
        %v2014 = vadd.f32 %v1944, %v1974
        %v2015 = vadd.f32 %v1945, %v1973
        %v2016 = vadd.f32 %v1946, %v1974
        %v2017 = vadd.f32 %v1947, %v1973
        %v2018 = vadd.f32 %v1948, %v1974
        %v2019 = vadd.f32 %v1949, %v1973
        %v2020 = vadd.f32 %v1950, %v1974
        %v2021 = vadd.f32 %v1951, %v1973
        %v2022 = vadd.f32 %v1952, %v1974
        %v2023 = vadd.f32 %v1953, %v1973
        %v2024 = vadd.f32 %v1954, %v1974
        %v2025 = vadd.f32 %v1955, %v1973
        %v2026 = vadd.f32 %v1956, %v1974
        %v2027 = vadd.f32 %v1957, %v1973
        %v2028 = vadd.f32 %v1958, %v1974
        %v2029 = vadd.f32 %v1959, %v1973
        %v2030 = vadd.f32 %v1960, %v1974
        %v2031 = vadd.f32 %v1961, %v1973
        %v2032 = vadd.f32 %v1962, %v1974
        %v2033 = vadd.f32 %v1963, %v1973
        %v2034 = vadd.f32 %v1964, %v1974
        %v2035 = vadd.f32 %v1965, %v1973
        %v2036 = vadd.f32 %v1966, %v1974
        %v2037 = vadd.f32 %v1967, %v1973
        %v2038 = vadd.f32 %v1968, %v1974
        %v2039 = vadd.f32 %v1969, %v1973
        %v2040 = vadd.f32 %v1970, %v1974
        %v2041 = vpack.c.bf16 %v1978, %v1977
        %v2042 = vpack.c.bf16 %v1980, %v1979
        %v2043 = vpack.c.bf16 %v1982, %v1981
        %v2044 = vpack.c.bf16 %v1984, %v1983
        %v2045 = vpack.c.bf16 %v1986, %v1985
        %v2046 = vpack.c.bf16 %v1988, %v1987
        %v2047 = vpack.c.bf16 %v1990, %v1989
        %v2048 = vpack.c.bf16 %v1992, %v1991
        %v2049 = vpack.c.bf16 %v1994, %v1993
        %v2050 = vpack.c.bf16 %v1996, %v1995
        %v2051 = vpack.c.bf16 %v1998, %v1997
        %v2052 = vpack.c.bf16 %v2000, %v1999
        %v2053 = vpack.c.bf16 %v2002, %v2001
        %v2054 = vpack.c.bf16 %v2004, %v2003
        %v2055 = vpack.c.bf16 %v2006, %v2005
        %v2056 = vpack.c.bf16 %v2008, %v2007
        %v2057 = vpack.c.bf16 %v2010, %v2009
        %v2058 = vpack.c.bf16 %v2012, %v2011
        %v2059 = vpack.c.bf16 %v2014, %v2013
        %v2060 = vpack.c.bf16 %v2016, %v2015
        %v2061 = vpack.c.bf16 %v2018, %v2017
        %v2062 = vpack.c.bf16 %v2020, %v2019
        %v2063 = vpack.c.bf16 %v2022, %v2021
        %v2064 = vpack.c.bf16 %v2024, %v2023
        %v2065 = vpack.c.bf16 %v2026, %v2025
        %v2066 = vpack.c.bf16 %v2028, %v2027
        %v2067 = vpack.c.bf16 %v2030, %v2029
        %v2068 = vpack.c.bf16 %v2032, %v2031
        %v2069 = vpack.c.bf16 %v2034, %v2033
        %v2070 = vpack.c.bf16 %v2036, %v2035
        %v2071 = vpack.c.bf16 %v2038, %v2037
        %v2072 = vpack.c.bf16 %v2040, %v2039
        %2073 = vst [vmem:[%s286] sm:$0xff] %v2041
        %2074 = vst [vmem:[%s286 + $0x8] sm:$0xff] %v2042
        %2075 = vst [vmem:[%s286 + $0x10] sm:$0xff] %v2043
        %2076 = vst [vmem:[%s286 + $0x18] sm:$0xff] %v2044
        %2077 = vst [vmem:[%s286 + $0x20] sm:$0xff] %v2045
        %2078 = vst [vmem:[%s286 + $0x28] sm:$0xff] %v2046
        %2079 = vst [vmem:[%s286 + $0x30] sm:$0xff] %v2047
        %2080 = vst [vmem:[%s286 + $0x38] sm:$0xff] %v2048
        %2081 = vst [vmem:[%s286 + $0x40] sm:$0xff] %v2049
        %2082 = vst [vmem:[%s286 + $0x48] sm:$0xff] %v2050
        %2083 = vst [vmem:[%s286 + $0x50] sm:$0xff] %v2051
        %2084 = vst [vmem:[%s286 + $0x58] sm:$0xff] %v2052
        %2085 = vst [vmem:[%s286 + $0x60] sm:$0xff] %v2053
        %2086 = vst [vmem:[%s286 + $0x68] sm:$0xff] %v2054
        %2087 = vst [vmem:[%s286 + $0x70] sm:$0xff] %v2055
        %2088 = vst [vmem:[%s286 + $0x78] sm:$0xff] %v2056
        %2089 = vst [vmem:[%s286 + $0x80] sm:$0xff] %v2057
        %2090 = vst [vmem:[%s286 + $0x88] sm:$0xff] %v2058
        %2091 = vst [vmem:[%s286 + $0x90] sm:$0xff] %v2059
        %2092 = vst [vmem:[%s286 + $0x98] sm:$0xff] %v2060
        %2093 = vst [vmem:[%s286 + $0xa0] sm:$0xff] %v2061
        %2094 = vst [vmem:[%s286 + $0xa8] sm:$0xff] %v2062
        %2095 = vst [vmem:[%s286 + $0xb0] sm:$0xff] %v2063
        %2096 = vst [vmem:[%s286 + $0xb8] sm:$0xff] %v2064
        %2097 = vst [vmem:[%s286 + $0xc0] sm:$0xff] %v2065
        %2098 = vst [vmem:[%s286 + $0xc8] sm:$0xff] %v2066
        %2099 = vst [vmem:[%s286 + $0xd0] sm:$0xff] %v2067
        %2100 = vst [vmem:[%s286 + $0xd8] sm:$0xff] %v2068
        %2101 = vst [vmem:[%s286 + $0xe0] sm:$0xff] %v2069
        %2102 = vst [vmem:[%s286 + $0xe8] sm:$0xff] %v2070
        %2103 = vst [vmem:[%s286 + $0xf0] sm:$0xff] %v2071
        %2104 = vst [vmem:[%s286 + $0xf8] sm:$0xff] %v2072
        %s2105 = sand.u32 %s137, 1
        %s2106 = scalar_lea.sflag [#allocation6], %s2105
        %s2107 = sand.u32 %s137, 1
        %s2108 = smul.addr %s2107, 256
        %s2109 = scalar_lea.vmem [#allocation10], %s2108
        // Predicated region
        $region49: #{tpu_custom_call.1} parent=35 // pred_check
          %p2110 = pneg %p147
        $region50: #{tpu_custom_call.1} parent=35 // pred_check_branch
          %2112 = sbr.rel (%p2110) target = $region52
        $region51: #{tpu_custom_call.1} parent=35 // pred_region
          %s2113 = smul.u32 32, %s33
          %2115 = vsyncadd %s2106, 0
          %s2116 = smul.addr %s2113, 2
          %s2117 = smul.addr %s2116, 4
          %s2118 = scalar_lea.hbm %s5, %s2117
          %s2119 = sshll.u32 %s2109, 4
          %s2120 = int_to_ptr.vmem [resolvable:$true] %s2119
          %s2121 = sshll.u32 %s2118, 4
          %s2122 = int_to_ptr.hbm [resolvable:$true] %s2121
          %2127 = dma.vmem_to_hbm [thread:$0]  %s2120, 4096, %s2122, %s2106, 128, 128, 8
        $region52: #{tpu_custom_call.1} parent=35 // pred_fallthru
          _
      $region36: #{tpu_custom_call.1} parent=5 // pred_fallthru
        _
      %p2128 = scmp.le.s32.totalorder 2, %s28
      // Predicated region
      $region53: #{tpu_custom_call.1} parent=5 // pred_check
        %p2129 = pneg %p2128
      $region54: #{tpu_custom_call.1} parent=5 // pred_check_branch
        %2131 = sbr.rel (%p2129) target = $region56
      $region55: #{tpu_custom_call.1} parent=5 // pred_region
        %s2132 = ssub.s32 %s28, 2
        // Predicated region
        $region57: #{tpu_custom_call.1} parent=55 // pred_check
          %p2133 = pneg %p153
        $region58: #{tpu_custom_call.1} parent=55 // pred_check_branch
          %2135 = sbr.rel (%p2133) target = $region60
        $region59: #{tpu_custom_call.1} parent=55 // pred_region
          %s2136 = sand.u32 %s138, 1
          %s2137 = scalar_lea.sflag [#allocation6], %s2136
          %s2138 = sand.u32 %s138, 1
          %s2139 = smul.addr %s2138, 256
          %s2140 = scalar_lea.vmem [#allocation10], %s2139
          %2142 = dma.done %s2137, 4096
        $region60: #{tpu_custom_call.1} parent=55 // pred_fallthru
          _
      $region56: #{tpu_custom_call.1} parent=5 // pred_fallthru
        _
    $region6: #{tpu_custom_call.1} parent=1 // loop_footer
      %s32 = sadd.s32 1, %s28
    $region7: #{tpu_custom_call.1} parent=1 // loop_footer_branch
      %27 = sbr.rel target = $region3
    $region8: #{tpu_custom_call.1} parent=1 // loop_exit
      _
    %2143 = vsyncpa [#allocation5], 1
    %s2144 = scalar_lea.sflag [#allocation5], 1
    %2145 = vsyncpa %s2144, 1
    %2146 = vsyncpa [#allocation8], 1
    %s2147 = scalar_lea.sflag [#allocation8], 1
    %2148 = vsyncpa %s2147, 1
    %2149 = vsyncpa [#allocation6], 1
    %s2150 = scalar_lea.sflag [#allocation6], 1
    %2151 = vsyncpa %s2150, 1

</llo_original>
